<compile_context>
chip_gen: v7x
topology: tpu7x:2x2x1
jax: 0.10.0
libtpu: 0.0.40
codegen_flags: <defaults>
</compile_context>

<pallas_src>
import numpy as np
import jax
import jax.numpy as jnp
from jax import lax
from jax.experimental import pallas as pl
from jax.experimental.pallas import tpu as pltpu

# --- module constants (match the PyTorch script) ---
NB = 16
NF1 = 64
NF2 = 64
RCUT = 5.0
L_BOX = 20.0
W_WIDTH = 0.2 * RCUT / NB            # = 0.0625
NEG_INV_W = -1.0 / W_WIDTH           # = -16.0
INV_RCUT = 1.0 / RCUT
INV_LBOX = 1.0 / L_BOX
LANES = 128

# basis centers baked into the kernel as compile-time constants
RB_CENTERS = tuple(np.linspace(0.1, RCUT, NB, dtype=np.float32).tolist())


def _envelope(t):
    """1 - 28 t^6 + 48 t^7 - 21 t^8"""
    t2 = t * t
    t4 = t2 * t2
    t6 = t4 * t2
    t7 = t6 * t
    t8 = t4 * t4
    return 1.0 - 28.0 * t6 + 48.0 * t7 - 21.0 * t8


def _segment_onehot(shape, seg_axis, idx_axis, n_per_seg, dtype):
    """One-hot segment matrix: 1 iff packed-atom index lies in segment's lane block.

    Built from iota + integer multiply + compares only (no int div/mod in-kernel).
    """
    q = lax.broadcasted_iota(jnp.int32, shape, idx_axis)
    s = lax.broadcasted_iota(jnp.int32, shape, seg_axis)
    lo = s * n_per_seg
    return jnp.logical_and(q >= lo, q < lo + n_per_seg).astype(dtype)


def _nnp_kernel(rows_ref, cols_ref, w1t_ref, b1_ref, w2t_ref, b2_ref, w3_ref,
                out_ref, desc_ref):
    # rows_ref : (1, 2*N, B_TILE)  [c*N+i, b] -> coord c of atom i, tile-batch b
    # cols_ref : (1, 2, M)         [c, b*N+j] -> coord c of atom j, tile-batch b
    # desc_ref : (NB, M) VMEM scratch, atoms on lanes
    _, two_n, bt = rows_ref.shape
    n = two_n // 2
    m = n * bt
    f32 = jnp.float32

    rxy = rows_ref[0]                        # (2N, B_TILE)
    cxy = cols_ref[0]                        # (2, M)
    cx_small = rxy[0:n, :]                   # (N, B_TILE)
    cy_small = rxy[n:, :]                    # (N, B_TILE)
    cx_j = cxy[0:1, :]                       # (1, M)
    cy_j = cxy[1:2, :]                       # (1, M)

    # one-hot expand matrix E (B_TILE, M): E[b, q] = 1 iff lane q is in batch b
    e_mat = _segment_onehot((bt, m), 0, 1, n, f32)
    # one-hot segment-sum matrix S (M, B_TILE)
    s_mat = _segment_onehot((m, bt), 1, 0, n, f32)

    # broadcast per-(tile-batch) row coords across that batch's lane block (MXU)
    cx_i = jnp.dot(cx_small, e_mat, preferred_element_type=f32)   # (N, M)
    cy_i = jnp.dot(cy_small, e_mat, preferred_element_type=f32)   # (N, M)

    # pairwise displacements with minimum-image wrap (box length L_BOX)
    dx = cx_i - cx_j
    dy = cy_i - cy_j
    dx = dx - jnp.round(dx * INV_LBOX) * L_BOX
    dy = dy - jnp.round(dy * INV_LBOX) * L_BOX
    dist = jnp.sqrt(dx * dx + dy * dy)                            # (N, M)

    # polynomial envelope (not clamped past RCUT -- matches the reference),
    # with the self-pair of each lane block masked out.
    env = _envelope(dist * INV_RCUT)
    ii = lax.broadcasted_iota(jnp.int32, (n, m), 0)
    qq = lax.broadcasted_iota(jnp.int32, (n, m), 1)
    d_iq = qq - ii
    is_diag = d_iq == 0
    for b in range(1, bt):                   # q == b*N + i  <=>  self pair in block b
        is_diag = jnp.logical_or(is_diag, d_iq == b * n)
    envm = jnp.where(is_diag, 0.0, env)                           # (N, M)

    # radial-basis expansion: unrolled loop over the NB centers, no 3-D tensor.
    # Each within-batch (N, N) block of dist is symmetric, so reducing over the
    # sublane axis gives the descriptor of the lane atom (b, j) directly.
    for k, rb_k in enumerate(RB_CENTERS):
        diff = dist - rb_k
        g = jnp.exp(diff * diff * NEG_INV_W) * envm               # (N, M)
        desc_ref[k:k + 1, :] = jnp.sum(g, axis=0, keepdims=True)  # (1, M)
    desc_t = desc_ref[...]                                        # (NB, M)

    # MLP, transposed so atoms stay on the lane axis: h = silu(W^T h_prev + b)
    h1 = jnp.dot(w1t_ref[...], desc_t, preferred_element_type=f32) + b1_ref[...]
    h1 = h1 * jax.nn.sigmoid(h1)                                  # (NF1, M)
    h2 = jnp.dot(w2t_ref[...], h1, preferred_element_type=f32) + b2_ref[...]
    h2 = h2 * jax.nn.sigmoid(h2)                                  # (NF2, M)

    # per-batch energy: reduce h2 over each batch's atoms first (MXU segment sum),
    # then the 64-wide output head.  N_atoms * b3 is added outside the kernel.
    hsum = jnp.dot(h2, s_mat, preferred_element_type=f32)         # (NF2, B_TILE)
    tot = jnp.sum(hsum * w3_ref[...], axis=0, keepdims=True)      # (1, B_TILE)
    out_ref[0] = tot


def nnp_forward(coords, params):
    """coords: (N_batch, N_atoms, 2) float32 -> total energy per batch (N_batch,)."""
    n_batch, n_atoms, _ = coords.shape
    coords = coords.astype(jnp.float32)
    w1, b1, w2, b2, w3, b3 = params

    # pack B_TILE batch elements per grid step so their pairwise grids fill the
    # 128-lane axis (full vreg utilization at small atom counts).
    b_tile = max(1, LANES // n_atoms)
    n_groups = (n_batch + b_tile - 1) // b_tile
    pad = n_groups * b_tile - n_batch
    if pad:
        coords = jnp.concatenate(
            [coords, jnp.zeros((pad, n_atoms, 2), jnp.float32)], axis=0)
    m = b_tile * n_atoms

    grouped = coords.reshape(n_groups, b_tile, n_atoms, 2)        # [g, b, i, c]
    cols = grouped.transpose(0, 3, 1, 2).reshape(n_groups, 2, m)  # [g, c, b*N+j]
    rows = grouped.transpose(0, 3, 2, 1).reshape(                 # [g, c*N+i, b]
        n_groups, 2 * n_atoms, b_tile)

    w1t = w1.T                          # (NF1, NB)
    b1c = b1.reshape(NF1, 1)
    w2t = w2.T                          # (NF2, NF1)
    b2c = b2.reshape(NF2, 1)
    w3c = w3.reshape(NF2, 1)

    out = pl.pallas_call(
        _nnp_kernel,
        out_shape=jax.ShapeDtypeStruct((n_groups, 1, b_tile), jnp.float32),
        grid_spec=pltpu.PrefetchScalarGridSpec(
            num_scalar_prefetch=0,
            grid=(n_groups,),
            in_specs=[
                pl.BlockSpec((1, 2 * n_atoms, b_tile), lambda g: (g, 0, 0)),
                pl.BlockSpec((1, 2, m), lambda g: (g, 0, 0)),
                pl.BlockSpec((NF1, NB), lambda g: (0, 0)),
                pl.BlockSpec((NF1, 1), lambda g: (0, 0)),
                pl.BlockSpec((NF2, NF1), lambda g: (0, 0)),
                pl.BlockSpec((NF2, 1), lambda g: (0, 0)),
                pl.BlockSpec((NF2, 1), lambda g: (0, 0)),
            ],
            out_specs=pl.BlockSpec((1, 1, b_tile), lambda g: (g, 0, 0)),
            scratch_shapes=[pltpu.VMEM((NB, m), jnp.float32)],
        ),
        compiler_params=pltpu.CompilerParams(
            dimension_semantics=("parallel",)),
    )(rows, cols, w1t, b1c, w2t, b2c, w3c)

    # b3 folded outside the kernel: each batch energy gets + N_atoms * b3.
    total = out.reshape(n_groups * b_tile)[:n_batch]
    return total + jnp.float32(n_atoms) * b3.reshape(())


def nnp_reference(coords, params):
    """Pure-JAX reference mirroring the PyTorch forward."""
    rb = jnp.linspace(0.1, RCUT, NB, dtype=jnp.float32)
    w1, b1, w2, b2, w3, b3 = params
    n_atoms = coords.shape[1]
    d = coords[:, :, None, :] - coords[:, None, :, :]            # (B,N,N,2)
    d = d - jnp.round(d / L_BOX) * L_BOX
    dist = jnp.sqrt(jnp.sum(d * d, axis=-1))                     # (B,N,N)
    env = _envelope(dist / RCUT)
    mask = 1.0 - jnp.eye(n_atoms, dtype=coords.dtype)
    e = jnp.exp(-((dist[..., None] - rb) ** 2) / W_WIDTH) * env[..., None]
    desc = jnp.sum(e * mask[None, :, :, None], axis=2)           # (B,N,NB)
    h1 = jax.nn.silu(desc @ w1 + b1)
    h2 = jax.nn.silu(h1 @ w2 + b2)
    es = (h2 @ w3 + b3)[..., 0]                                  # (B,N)
    return jnp.sum(es, axis=-1)


def init_params(key):
    """Deterministic Linear inits (uniform(-1/sqrt(fan_in), 1/sqrt(fan_in)))."""
    ks = jax.random.split(key, 6)

    def lin(kw, kb, fan_in, fan_out):
        bound = 1.0 / (fan_in ** 0.5)
        w = jax.random.uniform(kw, (fan_in, fan_out), jnp.float32, -bound, bound)
        b = jax.random.uniform(kb, (fan_out,), jnp.float32, -bound, bound)
        return w, b

    w1, b1 = lin(ks[0], ks[1], NB, NF1)
    w2, b2 = lin(ks[2], ks[3], NF1, NF2)
    w3, b3 = lin(ks[4], ks[5], NF2, 1)
    return (w1, b1, w2, b2, w3, b3)


if __name__ == "__main__":
    key = jax.random.PRNGKey(0)
    kx, kp, kx2 = jax.random.split(key, 3)

    params = init_params(kp)
    fwd = jax.jit(nnp_forward)   # wrapper-side pack/reshape fused by XLA

    # primary test: small shape implied by the module (B=2 systems, N=8 atoms, 2D)
    n_batch, n_atoms = 2, 8
    coords = jax.random.uniform(kx, (n_batch, n_atoms, 2), jnp.float32, 0.0, 6.0)
    total_e = jax.block_until_ready(fwd(coords, params))
    ref = nnp_reference(coords, params)
    assert total_e.shape == (n_batch,)
    assert jnp.allclose(total_e, ref, rtol=1e-2, atol=1e-2), (total_e, ref)

    # second test: more batches than one lane-packed tile (exercises grid > 1)
    coords2 = jax.random.uniform(kx2, (20, n_atoms, 2), jnp.float32, 0.0, 6.0)
    total_e2 = jax.block_until_ready(fwd(coords2, params))
    ref2 = nnp_reference(coords2, params)
    assert jnp.allclose(total_e2, ref2, rtol=1e-2, atol=1e-2), (total_e2, ref2)

    print("KERNEL_OK")
</pallas_src>

<mosaic_0001>
module attributes {stable_mosaic.version = 11 : i64} {
  func.func @_nnp_kernel(%arg0: i32, %arg1: memref<1x16x16xf32, #tpu.memory_space<vmem>>, %arg2: memref<1x2x128xf32, #tpu.memory_space<vmem>>, %arg3: memref<64x16xf32, #tpu.memory_space<vmem>>, %arg4: memref<64x1xf32, #tpu.memory_space<vmem>>, %arg5: memref<64x64xf32, #tpu.memory_space<vmem>>, %arg6: memref<64x1xf32, #tpu.memory_space<vmem>>, %arg7: memref<64x1xf32, #tpu.memory_space<vmem>>, %arg8: memref<1x1x16xf32, #tpu.memory_space<vmem>>, %arg9: memref<16x128xf32, #tpu.memory_space<vmem>>) attributes {dimension_semantics = [#tpu.dimension_semantics<parallel>], iteration_bounds = array<i64: 1>, scalar_prefetch = 0 : i64, scratch_operands = 1 : i64, tpu.core_type = #tpu.core_type<tc>, window_params = [{transform_indices = @transform_0, window_bounds = array<i64: 1, 16, 16>}, {transform_indices = @transform_1, window_bounds = array<i64: 1, 2, 128>}, {pipeline_mode = #tpu.pipeline_mode<synchronous>, transform_indices = @transform_2, window_bounds = array<i64: 64, 16>}, {pipeline_mode = #tpu.pipeline_mode<synchronous>, transform_indices = @transform_3, window_bounds = array<i64: 64, 1>}, {pipeline_mode = #tpu.pipeline_mode<synchronous>, transform_indices = @transform_4, window_bounds = array<i64: 64, 64>}, {pipeline_mode = #tpu.pipeline_mode<synchronous>, transform_indices = @transform_5, window_bounds = array<i64: 64, 1>}, {pipeline_mode = #tpu.pipeline_mode<synchronous>, transform_indices = @transform_6, window_bounds = array<i64: 64, 1>}, {transform_indices = @transform_7, window_bounds = array<i64: 1, 1, 16>}]} {
    %c0 = arith.constant 0 : index
    %c0_0 = arith.constant 0 : index
    %c0_1 = arith.constant 0 : index
    %0 = vector.load %arg1[%c0, %c0_0, %c0_1] : memref<1x16x16xf32, #tpu.memory_space<vmem>>, vector<1x16x16xf32>
    %1 = vector.shape_cast %0 : vector<1x16x16xf32> to vector<16x16xf32>
    %c0_2 = arith.constant 0 : index
    %c0_3 = arith.constant 0 : index
    %c0_4 = arith.constant 0 : index
    %2 = vector.load %arg2[%c0_2, %c0_3, %c0_4] : memref<1x2x128xf32, #tpu.memory_space<vmem>>, vector<1x2x128xf32>
    %3 = vector.shape_cast %2 : vector<1x2x128xf32> to vector<2x128xf32>
    %4 = vector.extract_strided_slice %1 {offsets = [0, 0], sizes = [8, 16], strides = [1, 1]} : vector<16x16xf32> to vector<8x16xf32>
    %5 = vector.extract_strided_slice %1 {offsets = [8, 0], sizes = [8, 16], strides = [1, 1]} : vector<16x16xf32> to vector<8x16xf32>
    %6 = vector.extract_strided_slice %3 {offsets = [0, 0], sizes = [1, 128], strides = [1, 1]} : vector<2x128xf32> to vector<1x128xf32>
    %7 = vector.extract_strided_slice %3 {offsets = [1, 0], sizes = [1, 128], strides = [1, 1]} : vector<2x128xf32> to vector<1x128xf32>
    %8 = tpu.iota {dimensions = array<i32: 1>} : vector<16x128xi32>
    %9 = tpu.iota {dimensions = array<i32: 0>} : vector<16x128xi32>
    %c8_i32 = arith.constant 8 : i32
    %10 = vector.broadcast %c8_i32 : i32 to vector<16x128xi32>
    %11 = arith.muli %9, %10 : vector<16x128xi32>
    %12 = arith.cmpi sge, %8, %11 : vector<16x128xi32>
    %c8_i32_5 = arith.constant 8 : i32
    %13 = vector.broadcast %c8_i32_5 : i32 to vector<16x128xi32>
    %14 = arith.addi %11, %13 : vector<16x128xi32>
    %15 = arith.cmpi slt, %8, %14 : vector<16x128xi32>
    %16 = arith.andi %12, %15 : vector<16x128xi1>
    %17 = arith.extui %16 : vector<16x128xi1> to vector<16x128xi32>
    %18 = arith.sitofp %17 : vector<16x128xi32> to vector<16x128xf32>
    %19 = tpu.iota {dimensions = array<i32: 0>} : vector<128x16xi32>
    %20 = tpu.iota {dimensions = array<i32: 1>} : vector<128x16xi32>
    %c8_i32_6 = arith.constant 8 : i32
    %21 = vector.broadcast %c8_i32_6 : i32 to vector<128x16xi32>
    %22 = arith.muli %20, %21 : vector<128x16xi32>
    %23 = arith.cmpi sge, %19, %22 : vector<128x16xi32>
    %c8_i32_7 = arith.constant 8 : i32
    %24 = vector.broadcast %c8_i32_7 : i32 to vector<128x16xi32>
    %25 = arith.addi %22, %24 : vector<128x16xi32>
    %26 = arith.cmpi slt, %19, %25 : vector<128x16xi32>
    %27 = arith.andi %23, %26 : vector<128x16xi1>
    %28 = arith.extui %27 : vector<128x16xi1> to vector<128x16xi32>
    %29 = arith.sitofp %28 : vector<128x16xi32> to vector<128x16xf32>
    %cst = arith.constant dense<0.000000e+00> : vector<8x128xf32>
    %30 = tpu.matmul %4, %18, %cst {dimension_numbers = #tpu.dot_dimension_numbers<[1], [0], [0], [1], [0, 0, 1, 1], [], []>} : vector<8x16xf32>, vector<16x128xf32>, vector<8x128xf32> -> vector<8x128xf32>
    %cst_8 = arith.constant dense<0.000000e+00> : vector<8x128xf32>
    %31 = tpu.matmul %5, %18, %cst_8 {dimension_numbers = #tpu.dot_dimension_numbers<[1], [0], [0], [1], [0, 0, 1, 1], [], []>} : vector<8x16xf32>, vector<16x128xf32>, vector<8x128xf32> -> vector<8x128xf32>
    %32 = vector.broadcast %6 : vector<1x128xf32> to vector<8x128xf32>
    %33 = arith.subf %30, %32 : vector<8x128xf32>
    %34 = vector.broadcast %7 : vector<1x128xf32> to vector<8x128xf32>
    %35 = arith.subf %31, %34 : vector<8x128xf32>
    %cst_9 = arith.constant 5.000000e-02 : f32
    %36 = vector.broadcast %cst_9 : f32 to vector<8x128xf32>
    %37 = arith.mulf %33, %36 : vector<8x128xf32>
    %38 = math.roundeven %37 : vector<8x128xf32>
    %cst_10 = arith.constant 2.000000e+01 : f32
    %39 = vector.broadcast %cst_10 : f32 to vector<8x128xf32>
    %40 = arith.mulf %38, %39 : vector<8x128xf32>
    %41 = arith.subf %33, %40 : vector<8x128xf32>
    %cst_11 = arith.constant 5.000000e-02 : f32
    %42 = vector.broadcast %cst_11 : f32 to vector<8x128xf32>
    %43 = arith.mulf %35, %42 : vector<8x128xf32>
    %44 = math.roundeven %43 : vector<8x128xf32>
    %cst_12 = arith.constant 2.000000e+01 : f32
    %45 = vector.broadcast %cst_12 : f32 to vector<8x128xf32>
    %46 = arith.mulf %44, %45 : vector<8x128xf32>
    %47 = arith.subf %35, %46 : vector<8x128xf32>
    %48 = arith.mulf %41, %41 : vector<8x128xf32>
    %49 = arith.mulf %47, %47 : vector<8x128xf32>
    %50 = arith.addf %48, %49 : vector<8x128xf32>
    %51 = math.sqrt %50 : vector<8x128xf32>
    %cst_13 = arith.constant 2.000000e-01 : f32
    %52 = vector.broadcast %cst_13 : f32 to vector<8x128xf32>
    %53 = arith.mulf %51, %52 : vector<8x128xf32>
    %54 = arith.mulf %53, %53 : vector<8x128xf32>
    %55 = arith.mulf %54, %54 : vector<8x128xf32>
    %56 = arith.mulf %55, %54 : vector<8x128xf32>
    %57 = arith.mulf %56, %53 : vector<8x128xf32>
    %58 = arith.mulf %55, %55 : vector<8x128xf32>
    %cst_14 = arith.constant 2.800000e+01 : f32
    %59 = vector.broadcast %cst_14 : f32 to vector<8x128xf32>
    %60 = arith.mulf %59, %56 : vector<8x128xf32>
    %cst_15 = arith.constant 1.000000e+00 : f32
    %61 = vector.broadcast %cst_15 : f32 to vector<8x128xf32>
    %62 = arith.subf %61, %60 : vector<8x128xf32>
    %cst_16 = arith.constant 4.800000e+01 : f32
    %63 = vector.broadcast %cst_16 : f32 to vector<8x128xf32>
    %64 = arith.mulf %63, %57 : vector<8x128xf32>
    %65 = arith.addf %62, %64 : vector<8x128xf32>
    %cst_17 = arith.constant 2.100000e+01 : f32
    %66 = vector.broadcast %cst_17 : f32 to vector<8x128xf32>
    %67 = arith.mulf %66, %58 : vector<8x128xf32>
    %68 = arith.subf %65, %67 : vector<8x128xf32>
    %69 = tpu.iota {dimensions = array<i32: 0>} : vector<8x128xi32>
    %70 = tpu.iota {dimensions = array<i32: 1>} : vector<8x128xi32>
    %71 = arith.subi %70, %69 : vector<8x128xi32>
    %c0_i32 = arith.constant 0 : i32
    %72 = vector.broadcast %c0_i32 : i32 to vector<8x128xi32>
    %73 = arith.cmpi eq, %71, %72 : vector<8x128xi32>
    %c8_i32_18 = arith.constant 8 : i32
    %74 = vector.broadcast %c8_i32_18 : i32 to vector<8x128xi32>
    %75 = arith.cmpi eq, %71, %74 : vector<8x128xi32>
    %76 = arith.ori %73, %75 : vector<8x128xi1>
    %c16_i32 = arith.constant 16 : i32
    %77 = vector.broadcast %c16_i32 : i32 to vector<8x128xi32>
    %78 = arith.cmpi eq, %71, %77 : vector<8x128xi32>
    %79 = arith.ori %76, %78 : vector<8x128xi1>
    %c24_i32 = arith.constant 24 : i32
    %80 = vector.broadcast %c24_i32 : i32 to vector<8x128xi32>
    %81 = arith.cmpi eq, %71, %80 : vector<8x128xi32>
    %82 = arith.ori %79, %81 : vector<8x128xi1>
    %c32_i32 = arith.constant 32 : i32
    %83 = vector.broadcast %c32_i32 : i32 to vector<8x128xi32>
    %84 = arith.cmpi eq, %71, %83 : vector<8x128xi32>
    %85 = arith.ori %82, %84 : vector<8x128xi1>
    %c40_i32 = arith.constant 40 : i32
    %86 = vector.broadcast %c40_i32 : i32 to vector<8x128xi32>
    %87 = arith.cmpi eq, %71, %86 : vector<8x128xi32>
    %88 = arith.ori %85, %87 : vector<8x128xi1>
    %c48_i32 = arith.constant 48 : i32
    %89 = vector.broadcast %c48_i32 : i32 to vector<8x128xi32>
    %90 = arith.cmpi eq, %71, %89 : vector<8x128xi32>
    %91 = arith.ori %88, %90 : vector<8x128xi1>
    %c56_i32 = arith.constant 56 : i32
    %92 = vector.broadcast %c56_i32 : i32 to vector<8x128xi32>
    %93 = arith.cmpi eq, %71, %92 : vector<8x128xi32>
    %94 = arith.ori %91, %93 : vector<8x128xi1>
    %c64_i32 = arith.constant 64 : i32
    %95 = vector.broadcast %c64_i32 : i32 to vector<8x128xi32>
    %96 = arith.cmpi eq, %71, %95 : vector<8x128xi32>
    %97 = arith.ori %94, %96 : vector<8x128xi1>
    %c72_i32 = arith.constant 72 : i32
    %98 = vector.broadcast %c72_i32 : i32 to vector<8x128xi32>
    %99 = arith.cmpi eq, %71, %98 : vector<8x128xi32>
    %100 = arith.ori %97, %99 : vector<8x128xi1>
    %c80_i32 = arith.constant 80 : i32
    %101 = vector.broadcast %c80_i32 : i32 to vector<8x128xi32>
    %102 = arith.cmpi eq, %71, %101 : vector<8x128xi32>
    %103 = arith.ori %100, %102 : vector<8x128xi1>
    %c88_i32 = arith.constant 88 : i32
    %104 = vector.broadcast %c88_i32 : i32 to vector<8x128xi32>
    %105 = arith.cmpi eq, %71, %104 : vector<8x128xi32>
    %106 = arith.ori %103, %105 : vector<8x128xi1>
    %c96_i32 = arith.constant 96 : i32
    %107 = vector.broadcast %c96_i32 : i32 to vector<8x128xi32>
    %108 = arith.cmpi eq, %71, %107 : vector<8x128xi32>
    %109 = arith.ori %106, %108 : vector<8x128xi1>
    %c104_i32 = arith.constant 104 : i32
    %110 = vector.broadcast %c104_i32 : i32 to vector<8x128xi32>
    %111 = arith.cmpi eq, %71, %110 : vector<8x128xi32>
    %112 = arith.ori %109, %111 : vector<8x128xi1>
    %c112_i32 = arith.constant 112 : i32
    %113 = vector.broadcast %c112_i32 : i32 to vector<8x128xi32>
    %114 = arith.cmpi eq, %71, %113 : vector<8x128xi32>
    %115 = arith.ori %112, %114 : vector<8x128xi1>
    %c120_i32 = arith.constant 120 : i32
    %116 = vector.broadcast %c120_i32 : i32 to vector<8x128xi32>
    %117 = arith.cmpi eq, %71, %116 : vector<8x128xi32>
    %118 = arith.ori %115, %117 : vector<8x128xi1>
    %cst_19 = arith.constant 0.000000e+00 : f32
    %119 = vector.broadcast %cst_19 : f32 to vector<8x128xf32>
    %120 = arith.select %118, %119, %68 : vector<8x128xi1>, vector<8x128xf32>
    %cst_20 = arith.constant 1.000000e-01 : f32
    %121 = vector.broadcast %cst_20 : f32 to vector<8x128xf32>
    %122 = arith.subf %51, %121 : vector<8x128xf32>
    %123 = arith.mulf %122, %122 : vector<8x128xf32>
    %cst_21 = arith.constant -1.600000e+01 : f32
    %124 = vector.broadcast %cst_21 : f32 to vector<8x128xf32>
    %125 = arith.mulf %123, %124 : vector<8x128xf32>
    %126 = math.exp %125 : vector<8x128xf32>
    %127 = arith.mulf %126, %120 : vector<8x128xf32>
    %cst_22 = arith.constant dense<0.000000e+00> : vector<128xf32>
    %128 = vector.multi_reduction <add>, %127, %cst_22 [0] : vector<8x128xf32> to vector<128xf32>
    %129 = vector.shape_cast %128 : vector<128xf32> to vector<1x128xf32>
    %c0_23 = arith.constant 0 : index
    %c0_24 = arith.constant 0 : index
    %130 = vector.load %arg9[%c0_23, %c0_24] : memref<16x128xf32, #tpu.memory_space<vmem>>, vector<1x128xf32>
    tpu.vector_store %arg9[%c0_23, %c0_24], %129 {strides = array<i32>} : memref<16x128xf32, #tpu.memory_space<vmem>>, vector<1x128xf32>,
    %cst_25 = arith.constant 0.426666677 : f32
    %131 = vector.broadcast %cst_25 : f32 to vector<8x128xf32>
    %132 = arith.subf %51, %131 : vector<8x128xf32>
    %133 = arith.mulf %132, %132 : vector<8x128xf32>
    %cst_26 = arith.constant -1.600000e+01 : f32
    %134 = vector.broadcast %cst_26 : f32 to vector<8x128xf32>
    %135 = arith.mulf %133, %134 : vector<8x128xf32>
    %136 = math.exp %135 : vector<8x128xf32>
    %137 = arith.mulf %136, %120 : vector<8x128xf32>
    %cst_27 = arith.constant dense<0.000000e+00> : vector<128xf32>
    %138 = vector.multi_reduction <add>, %137, %cst_27 [0] : vector<8x128xf32> to vector<128xf32>
    %139 = vector.shape_cast %138 : vector<128xf32> to vector<1x128xf32>
    %c1 = arith.constant 1 : index
    %c0_28 = arith.constant 0 : index
    %140 = vector.load %arg9[%c1, %c0_28] : memref<16x128xf32, #tpu.memory_space<vmem>>, vector<1x128xf32>
    tpu.vector_store %arg9[%c1, %c0_28], %139 {strides = array<i32>} : memref<16x128xf32, #tpu.memory_space<vmem>>, vector<1x128xf32>,
    %cst_29 = arith.constant 0.75333333 : f32
    %141 = vector.broadcast %cst_29 : f32 to vector<8x128xf32>
    %142 = arith.subf %51, %141 : vector<8x128xf32>
    %143 = arith.mulf %142, %142 : vector<8x128xf32>
    %cst_30 = arith.constant -1.600000e+01 : f32
    %144 = vector.broadcast %cst_30 : f32 to vector<8x128xf32>
    %145 = arith.mulf %143, %144 : vector<8x128xf32>
    %146 = math.exp %145 : vector<8x128xf32>
    %147 = arith.mulf %146, %120 : vector<8x128xf32>
    %cst_31 = arith.constant dense<0.000000e+00> : vector<128xf32>
    %148 = vector.multi_reduction <add>, %147, %cst_31 [0] : vector<8x128xf32> to vector<128xf32>
    %149 = vector.shape_cast %148 : vector<128xf32> to vector<1x128xf32>
    %c2 = arith.constant 2 : index
    %c0_32 = arith.constant 0 : index
    %150 = vector.load %arg9[%c2, %c0_32] : memref<16x128xf32, #tpu.memory_space<vmem>>, vector<1x128xf32>
    tpu.vector_store %arg9[%c2, %c0_32], %149 {strides = array<i32>} : memref<16x128xf32, #tpu.memory_space<vmem>>, vector<1x128xf32>,
    %cst_33 = arith.constant 1.080000e+00 : f32
    %151 = vector.broadcast %cst_33 : f32 to vector<8x128xf32>
    %152 = arith.subf %51, %151 : vector<8x128xf32>
    %153 = arith.mulf %152, %152 : vector<8x128xf32>
    %cst_34 = arith.constant -1.600000e+01 : f32
    %154 = vector.broadcast %cst_34 : f32 to vector<8x128xf32>
    %155 = arith.mulf %153, %154 : vector<8x128xf32>
    %156 = math.exp %155 : vector<8x128xf32>
    %157 = arith.mulf %156, %120 : vector<8x128xf32>
    %cst_35 = arith.constant dense<0.000000e+00> : vector<128xf32>
    %158 = vector.multi_reduction <add>, %157, %cst_35 [0] : vector<8x128xf32> to vector<128xf32>
    %159 = vector.shape_cast %158 : vector<128xf32> to vector<1x128xf32>
    %c3 = arith.constant 3 : index
    %c0_36 = arith.constant 0 : index
    %160 = vector.load %arg9[%c3, %c0_36] : memref<16x128xf32, #tpu.memory_space<vmem>>, vector<1x128xf32>
    tpu.vector_store %arg9[%c3, %c0_36], %159 {strides = array<i32>} : memref<16x128xf32, #tpu.memory_space<vmem>>, vector<1x128xf32>,
    %cst_37 = arith.constant 1.40666664 : f32
    %161 = vector.broadcast %cst_37 : f32 to vector<8x128xf32>
    %162 = arith.subf %51, %161 : vector<8x128xf32>
    %163 = arith.mulf %162, %162 : vector<8x128xf32>
    %cst_38 = arith.constant -1.600000e+01 : f32
    %164 = vector.broadcast %cst_38 : f32 to vector<8x128xf32>
    %165 = arith.mulf %163, %164 : vector<8x128xf32>
    %166 = math.exp %165 : vector<8x128xf32>
    %167 = arith.mulf %166, %120 : vector<8x128xf32>
    %cst_39 = arith.constant dense<0.000000e+00> : vector<128xf32>
    %168 = vector.multi_reduction <add>, %167, %cst_39 [0] : vector<8x128xf32> to vector<128xf32>
    %169 = vector.shape_cast %168 : vector<128xf32> to vector<1x128xf32>
    %c4 = arith.constant 4 : index
    %c0_40 = arith.constant 0 : index
    %170 = vector.load %arg9[%c4, %c0_40] : memref<16x128xf32, #tpu.memory_space<vmem>>, vector<1x128xf32>
    tpu.vector_store %arg9[%c4, %c0_40], %169 {strides = array<i32>} : memref<16x128xf32, #tpu.memory_space<vmem>>, vector<1x128xf32>,
    %cst_41 = arith.constant 1.73333335 : f32
    %171 = vector.broadcast %cst_41 : f32 to vector<8x128xf32>
    %172 = arith.subf %51, %171 : vector<8x128xf32>
    %173 = arith.mulf %172, %172 : vector<8x128xf32>
    %cst_42 = arith.constant -1.600000e+01 : f32
    %174 = vector.broadcast %cst_42 : f32 to vector<8x128xf32>
    %175 = arith.mulf %173, %174 : vector<8x128xf32>
    %176 = math.exp %175 : vector<8x128xf32>
    %177 = arith.mulf %176, %120 : vector<8x128xf32>
    %cst_43 = arith.constant dense<0.000000e+00> : vector<128xf32>
    %178 = vector.multi_reduction <add>, %177, %cst_43 [0] : vector<8x128xf32> to vector<128xf32>
    %179 = vector.shape_cast %178 : vector<128xf32> to vector<1x128xf32>
    %c5 = arith.constant 5 : index
    %c0_44 = arith.constant 0 : index
    %180 = vector.load %arg9[%c5, %c0_44] : memref<16x128xf32, #tpu.memory_space<vmem>>, vector<1x128xf32>
    tpu.vector_store %arg9[%c5, %c0_44], %179 {strides = array<i32>} : memref<16x128xf32, #tpu.memory_space<vmem>>, vector<1x128xf32>,
    %cst_45 = arith.constant 2.060000e+00 : f32
    %181 = vector.broadcast %cst_45 : f32 to vector<8x128xf32>
    %182 = arith.subf %51, %181 : vector<8x128xf32>
    %183 = arith.mulf %182, %182 : vector<8x128xf32>
    %cst_46 = arith.constant -1.600000e+01 : f32
    %184 = vector.broadcast %cst_46 : f32 to vector<8x128xf32>
    %185 = arith.mulf %183, %184 : vector<8x128xf32>
    %186 = math.exp %185 : vector<8x128xf32>
    %187 = arith.mulf %186, %120 : vector<8x128xf32>
    %cst_47 = arith.constant dense<0.000000e+00> : vector<128xf32>
    %188 = vector.multi_reduction <add>, %187, %cst_47 [0] : vector<8x128xf32> to vector<128xf32>
    %189 = vector.shape_cast %188 : vector<128xf32> to vector<1x128xf32>
    %c6 = arith.constant 6 : index
    %c0_48 = arith.constant 0 : index
    %190 = vector.load %arg9[%c6, %c0_48] : memref<16x128xf32, #tpu.memory_space<vmem>>, vector<1x128xf32>
    tpu.vector_store %arg9[%c6, %c0_48], %189 {strides = array<i32>} : memref<16x128xf32, #tpu.memory_space<vmem>>, vector<1x128xf32>,
    %cst_49 = arith.constant 2.38666677 : f32
    %191 = vector.broadcast %cst_49 : f32 to vector<8x128xf32>
    %192 = arith.subf %51, %191 : vector<8x128xf32>
    %193 = arith.mulf %192, %192 : vector<8x128xf32>
    %cst_50 = arith.constant -1.600000e+01 : f32
    %194 = vector.broadcast %cst_50 : f32 to vector<8x128xf32>
    %195 = arith.mulf %193, %194 : vector<8x128xf32>
    %196 = math.exp %195 : vector<8x128xf32>
    %197 = arith.mulf %196, %120 : vector<8x128xf32>
    %cst_51 = arith.constant dense<0.000000e+00> : vector<128xf32>
    %198 = vector.multi_reduction <add>, %197, %cst_51 [0] : vector<8x128xf32> to vector<128xf32>
    %199 = vector.shape_cast %198 : vector<128xf32> to vector<1x128xf32>
    %c7 = arith.constant 7 : index
    %c0_52 = arith.constant 0 : index
    %200 = vector.load %arg9[%c7, %c0_52] : memref<16x128xf32, #tpu.memory_space<vmem>>, vector<1x128xf32>
    tpu.vector_store %arg9[%c7, %c0_52], %199 {strides = array<i32>} : memref<16x128xf32, #tpu.memory_space<vmem>>, vector<1x128xf32>,
    %cst_53 = arith.constant 2.71333337 : f32
    %201 = vector.broadcast %cst_53 : f32 to vector<8x128xf32>
    %202 = arith.subf %51, %201 : vector<8x128xf32>
    %203 = arith.mulf %202, %202 : vector<8x128xf32>
    %cst_54 = arith.constant -1.600000e+01 : f32
    %204 = vector.broadcast %cst_54 : f32 to vector<8x128xf32>
    %205 = arith.mulf %203, %204 : vector<8x128xf32>
    %206 = math.exp %205 : vector<8x128xf32>
    %207 = arith.mulf %206, %120 : vector<8x128xf32>
    %cst_55 = arith.constant dense<0.000000e+00> : vector<128xf32>
    %208 = vector.multi_reduction <add>, %207, %cst_55 [0] : vector<8x128xf32> to vector<128xf32>
    %209 = vector.shape_cast %208 : vector<128xf32> to vector<1x128xf32>
    %c8 = arith.constant 8 : index
    %c0_56 = arith.constant 0 : index
    %210 = vector.load %arg9[%c8, %c0_56] : memref<16x128xf32, #tpu.memory_space<vmem>>, vector<1x128xf32>
    tpu.vector_store %arg9[%c8, %c0_56], %209 {strides = array<i32>} : memref<16x128xf32, #tpu.memory_space<vmem>>, vector<1x128xf32>,
    %cst_57 = arith.constant 3.040000e+00 : f32
    %211 = vector.broadcast %cst_57 : f32 to vector<8x128xf32>
    %212 = arith.subf %51, %211 : vector<8x128xf32>
    %213 = arith.mulf %212, %212 : vector<8x128xf32>
    %cst_58 = arith.constant -1.600000e+01 : f32
    %214 = vector.broadcast %cst_58 : f32 to vector<8x128xf32>
    %215 = arith.mulf %213, %214 : vector<8x128xf32>
    %216 = math.exp %215 : vector<8x128xf32>
    %217 = arith.mulf %216, %120 : vector<8x128xf32>
    %cst_59 = arith.constant dense<0.000000e+00> : vector<128xf32>
    %218 = vector.multi_reduction <add>, %217, %cst_59 [0] : vector<8x128xf32> to vector<128xf32>
    %219 = vector.shape_cast %218 : vector<128xf32> to vector<1x128xf32>
    %c9 = arith.constant 9 : index
    %c0_60 = arith.constant 0 : index
    %220 = vector.load %arg9[%c9, %c0_60] : memref<16x128xf32, #tpu.memory_space<vmem>>, vector<1x128xf32>
    tpu.vector_store %arg9[%c9, %c0_60], %219 {strides = array<i32>} : memref<16x128xf32, #tpu.memory_space<vmem>>, vector<1x128xf32>,
    %cst_61 = arith.constant 3.36666656 : f32
    %221 = vector.broadcast %cst_61 : f32 to vector<8x128xf32>
    %222 = arith.subf %51, %221 : vector<8x128xf32>
    %223 = arith.mulf %222, %222 : vector<8x128xf32>
    %cst_62 = arith.constant -1.600000e+01 : f32
    %224 = vector.broadcast %cst_62 : f32 to vector<8x128xf32>
    %225 = arith.mulf %223, %224 : vector<8x128xf32>
    %226 = math.exp %225 : vector<8x128xf32>
    %227 = arith.mulf %226, %120 : vector<8x128xf32>
    %cst_63 = arith.constant dense<0.000000e+00> : vector<128xf32>
    %228 = vector.multi_reduction <add>, %227, %cst_63 [0] : vector<8x128xf32> to vector<128xf32>
    %229 = vector.shape_cast %228 : vector<128xf32> to vector<1x128xf32>
    %c10 = arith.constant 10 : index
    %c0_64 = arith.constant 0 : index
    %230 = vector.load %arg9[%c10, %c0_64] : memref<16x128xf32, #tpu.memory_space<vmem>>, vector<1x128xf32>
    tpu.vector_store %arg9[%c10, %c0_64], %229 {strides = array<i32>} : memref<16x128xf32, #tpu.memory_space<vmem>>, vector<1x128xf32>,
    %cst_65 = arith.constant 3.69333339 : f32
    %231 = vector.broadcast %cst_65 : f32 to vector<8x128xf32>
    %232 = arith.subf %51, %231 : vector<8x128xf32>
    %233 = arith.mulf %232, %232 : vector<8x128xf32>
    %cst_66 = arith.constant -1.600000e+01 : f32
    %234 = vector.broadcast %cst_66 : f32 to vector<8x128xf32>
    %235 = arith.mulf %233, %234 : vector<8x128xf32>
    %236 = math.exp %235 : vector<8x128xf32>
    %237 = arith.mulf %236, %120 : vector<8x128xf32>
    %cst_67 = arith.constant dense<0.000000e+00> : vector<128xf32>
    %238 = vector.multi_reduction <add>, %237, %cst_67 [0] : vector<8x128xf32> to vector<128xf32>
    %239 = vector.shape_cast %238 : vector<128xf32> to vector<1x128xf32>
    %c11 = arith.constant 11 : index
    %c0_68 = arith.constant 0 : index
    %240 = vector.load %arg9[%c11, %c0_68] : memref<16x128xf32, #tpu.memory_space<vmem>>, vector<1x128xf32>
    tpu.vector_store %arg9[%c11, %c0_68], %239 {strides = array<i32>} : memref<16x128xf32, #tpu.memory_space<vmem>>, vector<1x128xf32>,
    %cst_69 = arith.constant 4.020000e+00 : f32
    %241 = vector.broadcast %cst_69 : f32 to vector<8x128xf32>
    %242 = arith.subf %51, %241 : vector<8x128xf32>
    %243 = arith.mulf %242, %242 : vector<8x128xf32>
    %cst_70 = arith.constant -1.600000e+01 : f32
    %244 = vector.broadcast %cst_70 : f32 to vector<8x128xf32>
    %245 = arith.mulf %243, %244 : vector<8x128xf32>
    %246 = math.exp %245 : vector<8x128xf32>
    %247 = arith.mulf %246, %120 : vector<8x128xf32>
    %cst_71 = arith.constant dense<0.000000e+00> : vector<128xf32>
    %248 = vector.multi_reduction <add>, %247, %cst_71 [0] : vector<8x128xf32> to vector<128xf32>
    %249 = vector.shape_cast %248 : vector<128xf32> to vector<1x128xf32>
    %c12 = arith.constant 12 : index
    %c0_72 = arith.constant 0 : index
    %250 = vector.load %arg9[%c12, %c0_72] : memref<16x128xf32, #tpu.memory_space<vmem>>, vector<1x128xf32>
    tpu.vector_store %arg9[%c12, %c0_72], %249 {strides = array<i32>} : memref<16x128xf32, #tpu.memory_space<vmem>>, vector<1x128xf32>,
    %cst_73 = arith.constant 4.34666681 : f32
    %251 = vector.broadcast %cst_73 : f32 to vector<8x128xf32>
    %252 = arith.subf %51, %251 : vector<8x128xf32>
    %253 = arith.mulf %252, %252 : vector<8x128xf32>
    %cst_74 = arith.constant -1.600000e+01 : f32
    %254 = vector.broadcast %cst_74 : f32 to vector<8x128xf32>
    %255 = arith.mulf %253, %254 : vector<8x128xf32>
    %256 = math.exp %255 : vector<8x128xf32>
    %257 = arith.mulf %256, %120 : vector<8x128xf32>
    %cst_75 = arith.constant dense<0.000000e+00> : vector<128xf32>
    %258 = vector.multi_reduction <add>, %257, %cst_75 [0] : vector<8x128xf32> to vector<128xf32>
    %259 = vector.shape_cast %258 : vector<128xf32> to vector<1x128xf32>
    %c13 = arith.constant 13 : index
    %c0_76 = arith.constant 0 : index
    %260 = vector.load %arg9[%c13, %c0_76] : memref<16x128xf32, #tpu.memory_space<vmem>>, vector<1x128xf32>
    tpu.vector_store %arg9[%c13, %c0_76], %259 {strides = array<i32>} : memref<16x128xf32, #tpu.memory_space<vmem>>, vector<1x128xf32>,
    %cst_77 = arith.constant 4.67333317 : f32
    %261 = vector.broadcast %cst_77 : f32 to vector<8x128xf32>
    %262 = arith.subf %51, %261 : vector<8x128xf32>
    %263 = arith.mulf %262, %262 : vector<8x128xf32>
    %cst_78 = arith.constant -1.600000e+01 : f32
    %264 = vector.broadcast %cst_78 : f32 to vector<8x128xf32>
    %265 = arith.mulf %263, %264 : vector<8x128xf32>
    %266 = math.exp %265 : vector<8x128xf32>
    %267 = arith.mulf %266, %120 : vector<8x128xf32>
    %cst_79 = arith.constant dense<0.000000e+00> : vector<128xf32>
    %268 = vector.multi_reduction <add>, %267, %cst_79 [0] : vector<8x128xf32> to vector<128xf32>
    %269 = vector.shape_cast %268 : vector<128xf32> to vector<1x128xf32>
    %c14 = arith.constant 14 : index
    %c0_80 = arith.constant 0 : index
    %270 = vector.load %arg9[%c14, %c0_80] : memref<16x128xf32, #tpu.memory_space<vmem>>, vector<1x128xf32>
    tpu.vector_store %arg9[%c14, %c0_80], %269 {strides = array<i32>} : memref<16x128xf32, #tpu.memory_space<vmem>>, vector<1x128xf32>,
    %cst_81 = arith.constant 5.000000e+00 : f32
    %271 = vector.broadcast %cst_81 : f32 to vector<8x128xf32>
    %272 = arith.subf %51, %271 : vector<8x128xf32>
    %273 = arith.mulf %272, %272 : vector<8x128xf32>
    %cst_82 = arith.constant -1.600000e+01 : f32
    %274 = vector.broadcast %cst_82 : f32 to vector<8x128xf32>
    %275 = arith.mulf %273, %274 : vector<8x128xf32>
    %276 = math.exp %275 : vector<8x128xf32>
    %277 = arith.mulf %276, %120 : vector<8x128xf32>
    %cst_83 = arith.constant dense<0.000000e+00> : vector<128xf32>
    %278 = vector.multi_reduction <add>, %277, %cst_83 [0] : vector<8x128xf32> to vector<128xf32>
    %279 = vector.shape_cast %278 : vector<128xf32> to vector<1x128xf32>
    %c15 = arith.constant 15 : index
    %c0_84 = arith.constant 0 : index
    %280 = vector.load %arg9[%c15, %c0_84] : memref<16x128xf32, #tpu.memory_space<vmem>>, vector<1x128xf32>
    tpu.vector_store %arg9[%c15, %c0_84], %279 {strides = array<i32>} : memref<16x128xf32, #tpu.memory_space<vmem>>, vector<1x128xf32>,
    %c0_85 = arith.constant 0 : index
    %c0_86 = arith.constant 0 : index
    %281 = vector.load %arg9[%c0_85, %c0_86] : memref<16x128xf32, #tpu.memory_space<vmem>>, vector<16x128xf32>
    %c0_87 = arith.constant 0 : index
    %c0_88 = arith.constant 0 : index
    %282 = vector.load %arg3[%c0_87, %c0_88] : memref<64x16xf32, #tpu.memory_space<vmem>>, vector<64x16xf32>
    %cst_89 = arith.constant dense<0.000000e+00> : vector<64x128xf32>
    %283 = tpu.matmul %282, %281, %cst_89 {dimension_numbers = #tpu.dot_dimension_numbers<[1], [0], [0], [1], [0, 0, 1, 1], [], []>} : vector<64x16xf32>, vector<16x128xf32>, vector<64x128xf32> -> vector<64x128xf32>
    %c0_90 = arith.constant 0 : index
    %c0_91 = arith.constant 0 : index
    %284 = vector.load %arg4[%c0_90, %c0_91] : memref<64x1xf32, #tpu.memory_space<vmem>>, vector<64x1xf32>
    %285 = vector.broadcast %284 : vector<64x1xf32> to vector<64x128xf32>
    %286 = arith.addf %283, %285 : vector<64x128xf32>
    %287 = arith.negf %286 : vector<64x128xf32>
    %288 = math.exp %287 : vector<64x128xf32>
    %cst_92 = arith.constant 1.000000e+00 : f32
    %289 = vector.broadcast %cst_92 : f32 to vector<64x128xf32>
    %290 = arith.addf %289, %288 : vector<64x128xf32>
    %291 = arith.divf %289, %290 : vector<64x128xf32>
    %292 = arith.mulf %286, %291 : vector<64x128xf32>
    %c0_93 = arith.constant 0 : index
    %c0_94 = arith.constant 0 : index
    %293 = vector.load %arg5[%c0_93, %c0_94] : memref<64x64xf32, #tpu.memory_space<vmem>>, vector<64x64xf32>
    %cst_95 = arith.constant dense<0.000000e+00> : vector<64x128xf32>
    %294 = tpu.matmul %293, %292, %cst_95 {dimension_numbers = #tpu.dot_dimension_numbers<[1], [0], [0], [1], [0, 0, 1, 1], [], []>} : vector<64x64xf32>, vector<64x128xf32>, vector<64x128xf32> -> vector<64x128xf32>
    %c0_96 = arith.constant 0 : index
    %c0_97 = arith.constant 0 : index
    %295 = vector.load %arg6[%c0_96, %c0_97] : memref<64x1xf32, #tpu.memory_space<vmem>>, vector<64x1xf32>
    %296 = vector.broadcast %295 : vector<64x1xf32> to vector<64x128xf32>
    %297 = arith.addf %294, %296 : vector<64x128xf32>
    %298 = arith.negf %297 : vector<64x128xf32>
    %299 = math.exp %298 : vector<64x128xf32>
    %cst_98 = arith.constant 1.000000e+00 : f32
    %300 = vector.broadcast %cst_98 : f32 to vector<64x128xf32>
    %301 = arith.addf %300, %299 : vector<64x128xf32>
    %302 = arith.divf %300, %301 : vector<64x128xf32>
    %303 = arith.mulf %297, %302 : vector<64x128xf32>
    %cst_99 = arith.constant dense<0.000000e+00> : vector<64x16xf32>
    %304 = tpu.matmul %303, %29, %cst_99 {dimension_numbers = #tpu.dot_dimension_numbers<[1], [0], [0], [1], [0, 0, 1, 1], [], []>} : vector<64x128xf32>, vector<128x16xf32>, vector<64x16xf32> -> vector<64x16xf32>
    %c0_100 = arith.constant 0 : index
    %c0_101 = arith.constant 0 : index
    %305 = vector.load %arg7[%c0_100, %c0_101] : memref<64x1xf32, #tpu.memory_space<vmem>>, vector<64x1xf32>
    %306 = vector.broadcast %305 : vector<64x1xf32> to vector<64x16xf32>
    %307 = arith.mulf %304, %306 : vector<64x16xf32>
    %cst_102 = arith.constant dense<0.000000e+00> : vector<16xf32>
    %308 = vector.multi_reduction <add>, %307, %cst_102 [0] : vector<64x16xf32> to vector<16xf32>
    %309 = vector.shape_cast %308 : vector<16xf32> to vector<1x16xf32>
    %c0_103 = arith.constant 0 : index
    %c0_104 = arith.constant 0 : index
    %c0_105 = arith.constant 0 : index
    %310 = vector.load %arg8[%c0_103, %c0_104, %c0_105] : memref<1x1x16xf32, #tpu.memory_space<vmem>>, vector<1x1x16xf32>
    %311 = vector.shape_cast %310 : vector<1x1x16xf32> to vector<1x16xf32>
    %312 = vector.shape_cast %309 : vector<1x16xf32> to vector<1x1x16xf32>
    tpu.vector_store %arg8[%c0_103, %c0_104, %c0_105], %312 {strides = array<i32>} : memref<1x1x16xf32, #tpu.memory_space<vmem>>, vector<1x1x16xf32>,
    return
  }
  func.func @transform_0(%arg0: i32) -> (i32, i32, i32) {
    %c0_i32 = arith.constant 0 : i32
    %c0_i32_0 = arith.constant 0 : i32
    %c0_i32_1 = arith.constant 0 : i32
    return %arg0, %c0_i32, %c0_i32_0 : i32, i32, i32
  }
  func.func @transform_1(%arg0: i32) -> (i32, i32, i32) {
    %c0_i32 = arith.constant 0 : i32
    %c0_i32_0 = arith.constant 0 : i32
    %c0_i32_1 = arith.constant 0 : i32
    return %arg0, %c0_i32, %c0_i32_0 : i32, i32, i32
  }
  func.func @transform_2(%arg0: i32) -> (i32, i32) {
    %c0_i32 = arith.constant 0 : i32
    %c0_i32_0 = arith.constant 0 : i32
    %c0_i32_1 = arith.constant 0 : i32
    return %c0_i32, %c0_i32_0 : i32, i32
  }
  func.func @transform_3(%arg0: i32) -> (i32, i32) {
    %c0_i32 = arith.constant 0 : i32
    %c0_i32_0 = arith.constant 0 : i32
    %c0_i32_1 = arith.constant 0 : i32
    return %c0_i32, %c0_i32_0 : i32, i32
  }
  func.func @transform_4(%arg0: i32) -> (i32, i32) {
    %c0_i32 = arith.constant 0 : i32
    %c0_i32_0 = arith.constant 0 : i32
    %c0_i32_1 = arith.constant 0 : i32
    return %c0_i32, %c0_i32_0 : i32, i32
  }
  func.func @transform_5(%arg0: i32) -> (i32, i32) {
    %c0_i32 = arith.constant 0 : i32
    %c0_i32_0 = arith.constant 0 : i32
    %c0_i32_1 = arith.constant 0 : i32
    return %c0_i32, %c0_i32_0 : i32, i32
  }
  func.func @transform_6(%arg0: i32) -> (i32, i32) {
    %c0_i32 = arith.constant 0 : i32
    %c0_i32_0 = arith.constant 0 : i32
    %c0_i32_1 = arith.constant 0 : i32
    return %c0_i32, %c0_i32_0 : i32, i32
  }
  func.func @transform_7(%arg0: i32) -> (i32, i32, i32) {
    %c0_i32 = arith.constant 0 : i32
    %c0_i32_0 = arith.constant 0 : i32
    %c0_i32_1 = arith.constant 0 : i32
    return %arg0, %c0_i32, %c0_i32_0 : i32, i32, i32
  }
}

</mosaic_0001>

<llo_original>
// kernel: nnp_forward.1
$region0: #{nnp_forward.1}
  #allocation0 [shape = 'u32[]', space=smem, size = 0x4, offset = 0x4, fixed_abs, tag = 'smem constant byte address 0x4 - core index']
  #allocation1 [shape = 'u32[144,128]{1,0:T(1,128)}', space=vmem, size = 0x12000, scoped, tag = 'internal scratch']
  #allocation2 [shape = 'f32[16,128]{1,0:T(8,128)}', space=vmem, size = 0x2000, scoped, tag = 'scratch operand']
  %s0 = inlined_call_operand.vmem [shape: f32[1,16,16], index: 0, kind: input, shape index: {}]
  %s1 = inlined_call_operand.vmem [shape: f32[1,2,128], index: 1, kind: input, shape index: {}]
  %s2 = inlined_call_operand.vmem [shape: f32[64,16], index: 2, kind: input, shape index: {}]
  %s3 = inlined_call_operand.vmem [shape: f32[64,1], index: 3, kind: input, shape index: {}]
  %s4 = inlined_call_operand.vmem [shape: f32[64,64], index: 4, kind: input, shape index: {}]
  %s5 = inlined_call_operand.vmem [shape: f32[64,1], index: 5, kind: input, shape index: {}]
  %s6 = inlined_call_operand.vmem [shape: f32[64,1], index: 6, kind: input, shape index: {}]
  %s7 = inlined_call_operand.vmem [shape: f32[1,1,16], index: 7, kind: output, shape index: {}]
  %s8 = sld [smem:[#allocation0]]
  $region38: #{nnp_forward.1} parent=0
    _
  %s10 = ssub.s32 1, %s8
  %s11 = scalar_select 0, %s10, %s8
  // Predicated region
  $region2: #{nnp_forward.1} parent=0 // pred_check
    _
  $region3: #{nnp_forward.1} parent=0 // pred_check_branch
    %13 = sbr.rel (0) target = $region5
  $region4: #{nnp_forward.1} parent=0 // pred_region
    _
  $region5: #{nnp_forward.1} parent=0 // pred_fallthru
    _
  // Predicated region
  $region6: #{nnp_forward.1} parent=0 // pred_check
    _
  $region7: #{nnp_forward.1} parent=0 // pred_check_branch
    %15 = sbr.rel (0) target = $region9
  $region8: #{nnp_forward.1} parent=0 // pred_region
    _
  $region9: #{nnp_forward.1} parent=0 // pred_fallthru
    _
  // Predicated region
  $region10: #{nnp_forward.1} parent=0 // pred_check
    _
  $region11: #{nnp_forward.1} parent=0 // pred_check_branch
    %17 = sbr.rel (0) target = $region13
  $region12: #{nnp_forward.1} parent=0 // pred_region
    _
  $region13: #{nnp_forward.1} parent=0 // pred_fallthru
    _
  // Predicated region
  $region14: #{nnp_forward.1} parent=0 // pred_check
    _
  $region15: #{nnp_forward.1} parent=0 // pred_check_branch
    %19 = sbr.rel (0) target = $region17
  $region16: #{nnp_forward.1} parent=0 // pred_region
    _
  $region17: #{nnp_forward.1} parent=0 // pred_fallthru
    _
  // Predicated region
  $region18: #{nnp_forward.1} parent=0 // pred_check
    _
  $region19: #{nnp_forward.1} parent=0 // pred_check_branch
    %21 = sbr.rel (0) target = $region21
  $region20: #{nnp_forward.1} parent=0 // pred_region
    _
  $region21: #{nnp_forward.1} parent=0 // pred_fallthru
    _
  // Predicated region
  $region22: #{nnp_forward.1} parent=0 // pred_check
    _
  $region23: #{nnp_forward.1} parent=0 // pred_check_branch
    %23 = sbr.rel (0) target = $region25
  $region24: #{nnp_forward.1} parent=0 // pred_region
    _
  $region25: #{nnp_forward.1} parent=0 // pred_fallthru
    _
  // Predicated region
  $region26: #{nnp_forward.1} parent=0 // pred_check
    _
  $region27: #{nnp_forward.1} parent=0 // pred_check_branch
    %25 = sbr.rel (0) target = $region29
  $region28: #{nnp_forward.1} parent=0 // pred_region
    _
  $region29: #{nnp_forward.1} parent=0 // pred_fallthru
    _
  %v26 = vld [vmem:[%s0] sm:$0xff]
  %v27 = vld [vmem:[%s0 + $0x8] sm:$0xff]
  %v28 = vld [vmem:[%s1] sm:$0x3]
  %v29 = vlaneseq
  %v30 = vand.u32 %v29, 127
  %v31 = vlaneseq
  %v32 = vshrl.u32 %v31, 7
  %v33 = vadd.s32 %v32, 8
  %v34 = vmul.u32 %v32, 8
  %v35 = vmul.u32 %v33, 8
  %vm36 = vcmp.ge.s32.totalorder %v30, %v34
  %vm37 = vcmp.ge.s32.totalorder %v30, %v35
  %v38 = vadd.s32 %v34, 8
  %v39 = vadd.s32 %v35, 8
  %vm40 = vcmp.lt.s32.totalorder %v30, %v38
  %vm41 = vcmp.lt.s32.totalorder %v30, %v39
  %vm42 = vmand %vm36, %vm40
  %vm43 = vmand %vm37, %vm41
  %v44 = vsel %vm42, 1, 0
  %v45 = vsel %vm43, 1, 0
  %v46 = vcvt.s32.f32 %v44
  %v47 = vcvt.s32.f32 %v45
  %v48 = vadd.s32 %v32, 16
  %v49 = vadd.s32 %v32, 24
  %v50 = vadd.s32 %v32, 32
  %v51 = vadd.s32 %v32, 40
  %v52 = vadd.s32 %v32, 48
  %v53 = vadd.s32 %v32, 56
  %v54 = vadd.s32 %v32, 64
  %v55 = vadd.s32 %v32, 72
  %v56 = vadd.s32 %v32, 80
  %v57 = vadd.s32 %v32, 88
  %v58 = vadd.s32 %v32, 96
  %v59 = vadd.s32 %v32, 104
  %v60 = vadd.s32 %v32, 112
  %v61 = vadd.s32 %v32, 120
  %v62 = vmul.u32 %v30, 8
  %vm63 = vcmp.ge.s32.totalorder %v32, %v62
  %vm64 = vcmp.ge.s32.totalorder %v33, %v62
  %vm65 = vcmp.ge.s32.totalorder %v48, %v62
  %vm66 = vcmp.ge.s32.totalorder %v49, %v62
  %vm67 = vcmp.ge.s32.totalorder %v50, %v62
  %vm68 = vcmp.ge.s32.totalorder %v51, %v62
  %vm69 = vcmp.ge.s32.totalorder %v52, %v62
  %vm70 = vcmp.ge.s32.totalorder %v53, %v62
  %vm71 = vcmp.ge.s32.totalorder %v54, %v62
  %vm72 = vcmp.ge.s32.totalorder %v55, %v62
  %vm73 = vcmp.ge.s32.totalorder %v56, %v62
  %vm74 = vcmp.ge.s32.totalorder %v57, %v62
  %vm75 = vcmp.ge.s32.totalorder %v58, %v62
  %vm76 = vcmp.ge.s32.totalorder %v59, %v62
  %vm77 = vcmp.ge.s32.totalorder %v60, %v62
  %vm78 = vcmp.ge.s32.totalorder %v61, %v62
  %v79 = vadd.s32 %v62, 8
  %vm80 = vcmp.lt.s32.totalorder %v32, %v79
  %vm81 = vcmp.lt.s32.totalorder %v33, %v79
  %vm82 = vcmp.lt.s32.totalorder %v48, %v79
  %vm83 = vcmp.lt.s32.totalorder %v49, %v79
  %vm84 = vcmp.lt.s32.totalorder %v50, %v79
  %vm85 = vcmp.lt.s32.totalorder %v51, %v79
  %vm86 = vcmp.lt.s32.totalorder %v52, %v79
  %vm87 = vcmp.lt.s32.totalorder %v53, %v79
  %vm88 = vcmp.lt.s32.totalorder %v54, %v79
  %vm89 = vcmp.lt.s32.totalorder %v55, %v79
  %vm90 = vcmp.lt.s32.totalorder %v56, %v79
  %vm91 = vcmp.lt.s32.totalorder %v57, %v79
  %vm92 = vcmp.lt.s32.totalorder %v58, %v79
  %vm93 = vcmp.lt.s32.totalorder %v59, %v79
  %vm94 = vcmp.lt.s32.totalorder %v60, %v79
  %vm95 = vcmp.lt.s32.totalorder %v61, %v79
  %vm96 = vmand %vm63, %vm80
  %vm97 = vmand %vm64, %vm81
  %vm98 = vmand %vm65, %vm82
  %vm99 = vmand %vm66, %vm83
  %vm100 = vmand %vm67, %vm84
  %vm101 = vmand %vm68, %vm85
  %vm102 = vmand %vm69, %vm86
  %vm103 = vmand %vm70, %vm87
  %vm104 = vmand %vm71, %vm88
  %vm105 = vmand %vm72, %vm89
  %vm106 = vmand %vm73, %vm90
  %vm107 = vmand %vm74, %vm91
  %vm108 = vmand %vm75, %vm92
  %vm109 = vmand %vm76, %vm93
  %vm110 = vmand %vm77, %vm94
  %vm111 = vmand %vm78, %vm95
  %v112 = vsel %vm96, 1, 0
  %v113 = vsel %vm97, 1, 0
  %v114 = vsel %vm98, 1, 0
  %v115 = vsel %vm99, 1, 0
  %v116 = vsel %vm100, 1, 0
  %v117 = vsel %vm101, 1, 0
  %v118 = vsel %vm102, 1, 0
  %v119 = vsel %vm103, 1, 0
  %v120 = vsel %vm104, 1, 0
  %v121 = vsel %vm105, 1, 0
  %v122 = vsel %vm106, 1, 0
  %v123 = vsel %vm107, 1, 0
  %v124 = vsel %vm108, 1, 0
  %v125 = vsel %vm109, 1, 0
  %v126 = vsel %vm110, 1, 0
  %v127 = vsel %vm111, 1, 0
  %v128 = vcvt.s32.f32 %v112
  %v129 = vcvt.s32.f32 %v113
  %v130 = vcvt.s32.f32 %v114
  %v131 = vcvt.s32.f32 %v115
  %v132 = vcvt.s32.f32 %v116
  %v133 = vcvt.s32.f32 %v117
  %v134 = vcvt.s32.f32 %v118
  %v135 = vcvt.s32.f32 %v119
  %v136 = vcvt.s32.f32 %v120
  %v137 = vcvt.s32.f32 %v121
  %v138 = vcvt.s32.f32 %v122
  %v139 = vcvt.s32.f32 %v123
  %v140 = vcvt.s32.f32 %v124
  %v141 = vcvt.s32.f32 %v125
  %v142 = vcvt.s32.f32 %v126
  %v143 = vcvt.s32.f32 %v127
  %vm144 = vcmask 130048
  %v146 = vsel %vm144, %v26, 0
  %148 = vmatprep.subr.mxu0 0.0
  %149 = vmatpush1.msra.mxu0 %v46
  %150 = vmatprep.subr.mxu0 0.0
  %151 = vmatpush1.msra.mxu0 %v47
  %152 = vmatprep.subr.mxu0 0.0
  %153 = vmatpush1.msra.mxu0 0.0
  %154 = vmatprep.subr.mxu0 0.0
  %155 = vmatpush1.msra.mxu0 0.0
  %156 = vmatprep.subr.mxu0 0.0
  %157 = vmatpush1.msra.mxu0 0.0
  %158 = vmatprep.subr.mxu0 0.0
  %159 = vmatpush1.msra.mxu0 0.0
  %160 = vmatprep.subr.mxu0 0.0
  %161 = vmatpush1.msra.mxu0 0.0
  %162 = vmatprep.subr.mxu0 0.0
  %163 = vmatpush1.msra.mxu0 0.0
  %164 = vmatprep.subr.mxu0 0.0
  %165 = vmatpush1.msra.mxu0 0.0
  %166 = vmatprep.subr.mxu0 0.0
  %167 = vmatpush1.msra.mxu0 0.0
  %168 = vmatprep.subr.mxu0 0.0
  %169 = vmatpush1.msra.mxu0 0.0
  %170 = vmatprep.subr.mxu0 0.0
  %171 = vmatpush1.msra.mxu0 0.0
  %172 = vmatprep.subr.mxu0 0.0
  %173 = vmatpush1.msra.mxu0 0.0
  %174 = vmatprep.subr.mxu0 0.0
  %175 = vmatpush1.msra.mxu0 0.0
  %176 = vmatprep.subr.mxu0 0.0
  %177 = vmatpush1.msra.mxu0 0.0
  %178 = vmatprep.subr.mxu0 0.0
  %179 = vmatpush1.msra.mxu0 0.0
  %180 = vmatprep.subr.mxu0 0.0
  %181 = vmatpush1.msra.mxu0 0.0
  %182 = vmatprep.subr.mxu0 0.0
  %183 = vmatpush1.msra.mxu0 0.0
  %184 = vmatprep.subr.mxu0 0.0
  %185 = vmatpush1.msra.mxu0 0.0
  %186 = vmatprep.subr.mxu0 0.0
  %187 = vmatpush1.msra.mxu0 0.0
  %188 = vmatprep.subr.mxu0 0.0
  %189 = vmatpush1.msra.mxu0 0.0
  %190 = vmatprep.subr.mxu0 0.0
  %191 = vmatpush1.msra.mxu0 0.0
  %192 = vmatprep.subr.mxu0 0.0
  %193 = vmatpush1.msra.mxu0 0.0
  %194 = vmatprep.subr.mxu0 0.0
  %195 = vmatpush1.msra.mxu0 0.0
  %196 = vmatprep.subr.mxu0 0.0
  %197 = vmatpush1.msra.mxu0 0.0
  %198 = vmatprep.subr.mxu0 0.0
  %199 = vmatpush1.msra.mxu0 0.0
  %200 = vmatprep.subr.mxu0 0.0
  %201 = vmatpush1.msra.mxu0 0.0
  %202 = vmatprep.subr.mxu0 0.0
  %203 = vmatpush1.msra.mxu0 0.0
  %204 = vmatprep.subr.mxu0 0.0
  %205 = vmatpush1.msra.mxu0 0.0
  %206 = vmatprep.subr.mxu0 0.0
  %207 = vmatpush1.msra.mxu0 0.0
  %208 = vmatprep.subr.mxu0 0.0
  %209 = vmatpush1.msra.mxu0 0.0
  %210 = vmatprep.subr.mxu0 0.0
  %211 = vmatpush1.msra.mxu0 0.0
  %212 = vmatprep.mubr.f32.mxu0 0.0
  %213 = vmatmul.mubr.f32.gmra.mrb[0].mxu0 %v146
  %v214 = vpop.f32.mrb[0].mxu0
  %v215 = vadd.f32 0.0, %v214
  %v216 = vpop.f32.mrb[0].mxu0
  %217 = vdwg.mxu0
  %v219 = vsel %vm144, %v27, 0
  %221 = vmatprep.subr.mxu0 0.0
  %222 = vmatpush1.msra.mxu0 %v46
  %223 = vmatprep.subr.mxu0 0.0
  %224 = vmatpush1.msra.mxu0 %v47
  %225 = vmatprep.subr.mxu0 0.0
  %226 = vmatpush1.msra.mxu0 0.0
  %227 = vmatprep.subr.mxu0 0.0
  %228 = vmatpush1.msra.mxu0 0.0
  %229 = vmatprep.subr.mxu0 0.0
  %230 = vmatpush1.msra.mxu0 0.0
  %231 = vmatprep.subr.mxu0 0.0
  %232 = vmatpush1.msra.mxu0 0.0
  %233 = vmatprep.subr.mxu0 0.0
  %234 = vmatpush1.msra.mxu0 0.0
  %235 = vmatprep.subr.mxu0 0.0
  %236 = vmatpush1.msra.mxu0 0.0
  %237 = vmatprep.subr.mxu0 0.0
  %238 = vmatpush1.msra.mxu0 0.0
  %239 = vmatprep.subr.mxu0 0.0
  %240 = vmatpush1.msra.mxu0 0.0
  %241 = vmatprep.subr.mxu0 0.0
  %242 = vmatpush1.msra.mxu0 0.0
  %243 = vmatprep.subr.mxu0 0.0
  %244 = vmatpush1.msra.mxu0 0.0
  %245 = vmatprep.subr.mxu0 0.0
  %246 = vmatpush1.msra.mxu0 0.0
  %247 = vmatprep.subr.mxu0 0.0
  %248 = vmatpush1.msra.mxu0 0.0
  %249 = vmatprep.subr.mxu0 0.0
  %250 = vmatpush1.msra.mxu0 0.0
  %251 = vmatprep.subr.mxu0 0.0
  %252 = vmatpush1.msra.mxu0 0.0
  %253 = vmatprep.subr.mxu0 0.0
  %254 = vmatpush1.msra.mxu0 0.0
  %255 = vmatprep.subr.mxu0 0.0
  %256 = vmatpush1.msra.mxu0 0.0
  %257 = vmatprep.subr.mxu0 0.0
  %258 = vmatpush1.msra.mxu0 0.0
  %259 = vmatprep.subr.mxu0 0.0
  %260 = vmatpush1.msra.mxu0 0.0
  %261 = vmatprep.subr.mxu0 0.0
  %262 = vmatpush1.msra.mxu0 0.0
  %263 = vmatprep.subr.mxu0 0.0
  %264 = vmatpush1.msra.mxu0 0.0
  %265 = vmatprep.subr.mxu0 0.0
  %266 = vmatpush1.msra.mxu0 0.0
  %267 = vmatprep.subr.mxu0 0.0
  %268 = vmatpush1.msra.mxu0 0.0
  %269 = vmatprep.subr.mxu0 0.0
  %270 = vmatpush1.msra.mxu0 0.0
  %271 = vmatprep.subr.mxu0 0.0
  %272 = vmatpush1.msra.mxu0 0.0
  %273 = vmatprep.subr.mxu0 0.0
  %274 = vmatpush1.msra.mxu0 0.0
  %275 = vmatprep.subr.mxu0 0.0
  %276 = vmatpush1.msra.mxu0 0.0
  %277 = vmatprep.subr.mxu0 0.0
  %278 = vmatpush1.msra.mxu0 0.0
  %279 = vmatprep.subr.mxu0 0.0
  %280 = vmatpush1.msra.mxu0 0.0
  %281 = vmatprep.subr.mxu0 0.0
  %282 = vmatpush1.msra.mxu0 0.0
  %283 = vmatprep.subr.mxu0 0.0
  %284 = vmatpush1.msra.mxu0 0.0
  %285 = vmatprep.mubr.f32.mxu0 0.0
  %286 = vmatmul.mubr.f32.gmra.mrb[0].mxu0 %v219
  %v287 = vpop.f32.mrb[0].mxu0
  %v288 = vadd.f32 0.0, %v287
  %v289 = vpop.f32.mrb[0].mxu0
  %290 = vdwg.mxu0
  %v291 = vlaneseq
  %v292 = vshrl.u32 %v291, 7
  %v293 = vsub.s32 0, %v292
  %v294 = vrot.slane %v28, %v293
  %v295 = vsub.f32 %v215, %v294
  %v296 = vlaneseq
  %v297 = vshrl.u32 %v296, 7
  %v298 = vsub.s32 1, %v297
  %v299 = vrot.slane %v28, %v298
  %v300 = vsub.f32 %v288, %v299
  %v301 = vmul.f32 %v295, 0.05
  %v302 = vround.ne.pseudo %v301
  %v303 = vmul.f32 %v302, 20.0
  %v304 = vsub.f32 %v295, %v303
  %v305 = vmul.f32 %v300, 0.05
  %v306 = vround.ne.pseudo %v305
  %v307 = vmul.f32 %v306, 20.0
  %v308 = vsub.f32 %v300, %v307
  %v309 = vmul.f32 %v304, %v304
  %v310 = vmul.f32 %v308, %v308
  %v311 = vadd.f32 %v309, %v310
  %v312 = vrsqrt.pop %v311
  %v313 = vmul.f32 %v311, %v312
  %vm314 = vcmp.eq.f32.partialorder %v311, inf
  %v315 = vsel %vm314, %v311, %v313
  %vm316 = vcmp.eq.f32.partialorder %v311, 0.0
  %v317 = vand.u32 %v311, 2147483648
  %v318 = vsel %vm316, %v317, %v315
  %v319 = vmul.f32 %v318, 0.2
  %v320 = vmul.f32 %v319, %v319
  %v321 = vmul.f32 %v320, %v320
  %v322 = vmul.f32 %v321, %v320
  %v323 = vmul.f32 %v322, %v319
  %v324 = vmul.f32 %v321, %v321
  %v325 = vmul.f32 %v322, 28.0
  %v326 = vsub.f32 1.0, %v325
  %v327 = vmul.f32 %v323, 48.0
  %v328 = vadd.f32 %v326, %v327
  %v329 = vmul.f32 %v324, 21.0
  %v330 = vsub.f32 %v328, %v329
  %v331 = vsub.s32 %v30, %v32
  %vm332 = vcmp.eq.s32.totalorder %v331, 0
  %vm333 = vcmp.eq.s32.totalorder %v331, 8
  %vm334 = vmor %vm332, %vm333
  %vm335 = vcmp.eq.s32.totalorder %v331, 16
  %vm336 = vmor %vm334, %vm335
  %vm337 = vcmp.eq.s32.totalorder %v331, 24
  %vm338 = vmor %vm336, %vm337
  %vm339 = vcmp.eq.s32.totalorder %v331, 32
  %vm340 = vmor %vm338, %vm339
  %vm341 = vcmp.eq.s32.totalorder %v331, 40
  %vm342 = vmor %vm340, %vm341
  %vm343 = vcmp.eq.s32.totalorder %v331, 48
  %vm344 = vmor %vm342, %vm343
  %vm345 = vcmp.eq.s32.totalorder %v331, 56
  %vm346 = vmor %vm344, %vm345
  %vm347 = vcmp.eq.s32.totalorder %v331, 64
  %vm348 = vmor %vm346, %vm347
  %vm349 = vcmp.eq.s32.totalorder %v331, 72
  %vm350 = vmor %vm348, %vm349
  %vm351 = vcmp.eq.s32.totalorder %v331, 80
  %vm352 = vmor %vm350, %vm351
  %vm353 = vcmp.eq.s32.totalorder %v331, 88
  %vm354 = vmor %vm352, %vm353
  %vm355 = vcmp.eq.s32.totalorder %v331, 96
  %vm356 = vmor %vm354, %vm355
  %vm357 = vcmp.eq.s32.totalorder %v331, 104
  %vm358 = vmor %vm356, %vm357
  %vm359 = vcmp.eq.s32.totalorder %v331, 112
  %vm360 = vmor %vm358, %vm359
  %vm361 = vcmp.eq.s32.totalorder %v331, 120
  %vm362 = vmor %vm360, %vm361
  %v363 = vsel %vm362, 0.0, %v330
  %v364 = vsub.f32 %v318, 0.1
  %v365 = vmul.f32 %v364, %v364
  %v366 = vmul.f32 %v365, -16.0
  %v367 = vmul.f32 %v366, 1.442695
  %v368 = vpow.pop %v367
  %v369 = vmul.f32 %v368, %v363
  %v370 = vrot.slane %v369, 4
  %v371 = vadd.f32 %v369, %v370
  %v372 = vrot.slane %v371, 2
  %v373 = vadd.f32 %v371, %v372
  %v374 = vrot.slane %v373, 1
  %v375 = vadd.f32 %v373, %v374
  %376 = vst [vmem:[#allocation2] sm:$0x1] %v375
  %v377 = vsub.f32 %v318, 0.42666668
  %v378 = vmul.f32 %v377, %v377
  %v379 = vmul.f32 %v378, -16.0
  %v380 = vmul.f32 %v379, 1.442695
  %v381 = vpow.pop %v380
  %v382 = vmul.f32 %v381, %v363
  %v383 = vrot.slane %v382, 4
  %v384 = vadd.f32 %v382, %v383
  %v385 = vrot.slane %v384, 2
  %v386 = vadd.f32 %v384, %v385
  %v387 = vrot.slane %v386, 1
  %v388 = vadd.f32 %v386, %v387
  %389 = vst [vmem:[#allocation2 + $0x1] sm:$0x1] %v388
  %v390 = vsub.f32 %v318, 0.75333333
  %v391 = vmul.f32 %v390, %v390
  %v392 = vmul.f32 %v391, -16.0
  %v393 = vmul.f32 %v392, 1.442695
  %v394 = vpow.pop %v393
  %v395 = vmul.f32 %v394, %v363
  %v396 = vrot.slane %v395, 4
  %v397 = vadd.f32 %v395, %v396
  %v398 = vrot.slane %v397, 2
  %v399 = vadd.f32 %v397, %v398
  %v400 = vrot.slane %v399, 1
  %v401 = vadd.f32 %v399, %v400
  %402 = vst [vmem:[#allocation2 + $0x2] sm:$0x1] %v401
  %v403 = vsub.f32 %v318, 1.08
  %v404 = vmul.f32 %v403, %v403
  %v405 = vmul.f32 %v404, -16.0
  %v406 = vmul.f32 %v405, 1.442695
  %v407 = vpow.pop %v406
  %v408 = vmul.f32 %v407, %v363
  %v409 = vrot.slane %v408, 4
  %v410 = vadd.f32 %v408, %v409
  %v411 = vrot.slane %v410, 2
  %v412 = vadd.f32 %v410, %v411
  %v413 = vrot.slane %v412, 1
  %v414 = vadd.f32 %v412, %v413
  %415 = vst [vmem:[#allocation2 + $0x3] sm:$0x1] %v414
  %v416 = vsub.f32 %v318, 1.4066666
  %v417 = vmul.f32 %v416, %v416
  %v418 = vmul.f32 %v417, -16.0
  %v419 = vmul.f32 %v418, 1.442695
  %v420 = vpow.pop %v419
  %v421 = vmul.f32 %v420, %v363
  %v422 = vrot.slane %v421, 4
  %v423 = vadd.f32 %v421, %v422
  %v424 = vrot.slane %v423, 2
  %v425 = vadd.f32 %v423, %v424
  %v426 = vrot.slane %v425, 1
  %v427 = vadd.f32 %v425, %v426
  %428 = vst [vmem:[#allocation2 + $0x4] sm:$0x1] %v427
  %v429 = vsub.f32 %v318, 1.7333333
  %v430 = vmul.f32 %v429, %v429
  %v431 = vmul.f32 %v430, -16.0
  %v432 = vmul.f32 %v431, 1.442695
  %v433 = vpow.pop %v432
  %v434 = vmul.f32 %v433, %v363
  %v435 = vrot.slane %v434, 4
  %v436 = vadd.f32 %v434, %v435
  %v437 = vrot.slane %v436, 2
  %v438 = vadd.f32 %v436, %v437
  %v439 = vrot.slane %v438, 1
  %v440 = vadd.f32 %v438, %v439
  %441 = vst [vmem:[#allocation2 + $0x5] sm:$0x1] %v440
  %v442 = vsub.f32 %v318, 2.06
  %v443 = vmul.f32 %v442, %v442
  %v444 = vmul.f32 %v443, -16.0
  %v445 = vmul.f32 %v444, 1.442695
  %v446 = vpow.pop %v445
  %v447 = vmul.f32 %v446, %v363
  %v448 = vrot.slane %v447, 4
  %v449 = vadd.f32 %v447, %v448
  %v450 = vrot.slane %v449, 2
  %v451 = vadd.f32 %v449, %v450
  %v452 = vrot.slane %v451, 1
  %v453 = vadd.f32 %v451, %v452
  %454 = vst [vmem:[#allocation2 + $0x6] sm:$0x1] %v453
  %v455 = vsub.f32 %v318, 2.3866668
  %v456 = vmul.f32 %v455, %v455
  %v457 = vmul.f32 %v456, -16.0
  %v458 = vmul.f32 %v457, 1.442695
  %v459 = vpow.pop %v458
  %v460 = vmul.f32 %v459, %v363
  %v461 = vrot.slane %v460, 4
  %v462 = vadd.f32 %v460, %v461
  %v463 = vrot.slane %v462, 2
  %v464 = vadd.f32 %v462, %v463
  %v465 = vrot.slane %v464, 1
  %v466 = vadd.f32 %v464, %v465
  %467 = vst [vmem:[#allocation2 + $0x7] sm:$0x1] %v466
  %v468 = vsub.f32 %v318, 2.7133334
  %v469 = vmul.f32 %v468, %v468
  %v470 = vmul.f32 %v469, -16.0
  %v471 = vmul.f32 %v470, 1.442695
  %v472 = vpow.pop %v471
  %v473 = vmul.f32 %v472, %v363
  %v474 = vrot.slane %v473, 4
  %v475 = vadd.f32 %v473, %v474
  %v476 = vrot.slane %v475, 2
  %v477 = vadd.f32 %v475, %v476
  %v478 = vrot.slane %v477, 1
  %v479 = vadd.f32 %v477, %v478
  %480 = vst [vmem:[#allocation2 + $0x8] sm:$0x1] %v479
  %v481 = vsub.f32 %v318, 3.04
  %v482 = vmul.f32 %v481, %v481
  %v483 = vmul.f32 %v482, -16.0
  %v484 = vmul.f32 %v483, 1.442695
  %v485 = vpow.pop %v484
  %v486 = vmul.f32 %v485, %v363
  %v487 = vrot.slane %v486, 4
  %v488 = vadd.f32 %v486, %v487
  %v489 = vrot.slane %v488, 2
  %v490 = vadd.f32 %v488, %v489
  %v491 = vrot.slane %v490, 1
  %v492 = vadd.f32 %v490, %v491
  %493 = vst [vmem:[#allocation2 + $0x9] sm:$0x1] %v492
  %v494 = vsub.f32 %v318, 3.3666666
  %v495 = vmul.f32 %v494, %v494
  %v496 = vmul.f32 %v495, -16.0
  %v497 = vmul.f32 %v496, 1.442695
  %v498 = vpow.pop %v497
  %v499 = vmul.f32 %v498, %v363
  %v500 = vrot.slane %v499, 4
  %v501 = vadd.f32 %v499, %v500
  %v502 = vrot.slane %v501, 2
  %v503 = vadd.f32 %v501, %v502
  %v504 = vrot.slane %v503, 1
  %v505 = vadd.f32 %v503, %v504
  %506 = vst [vmem:[#allocation2 + $0xa] sm:$0x1] %v505
  %v507 = vsub.f32 %v318, 3.6933334
  %v508 = vmul.f32 %v507, %v507
  %v509 = vmul.f32 %v508, -16.0
  %v510 = vmul.f32 %v509, 1.442695
  %v511 = vpow.pop %v510
  %v512 = vmul.f32 %v511, %v363
  %v513 = vrot.slane %v512, 4
  %v514 = vadd.f32 %v512, %v513
  %v515 = vrot.slane %v514, 2
  %v516 = vadd.f32 %v514, %v515
  %v517 = vrot.slane %v516, 1
  %v518 = vadd.f32 %v516, %v517
  %519 = vst [vmem:[#allocation2 + $0xb] sm:$0x1] %v518
  %v520 = vsub.f32 %v318, 4.02
  %v521 = vmul.f32 %v520, %v520
  %v522 = vmul.f32 %v521, -16.0
  %v523 = vmul.f32 %v522, 1.442695
  %v524 = vpow.pop %v523
  %v525 = vmul.f32 %v524, %v363
  %v526 = vrot.slane %v525, 4
  %v527 = vadd.f32 %v525, %v526
  %v528 = vrot.slane %v527, 2
  %v529 = vadd.f32 %v527, %v528
  %v530 = vrot.slane %v529, 1
  %v531 = vadd.f32 %v529, %v530
  %532 = vst [vmem:[#allocation2 + $0xc] sm:$0x1] %v531
  %v533 = vsub.f32 %v318, 4.346667
  %v534 = vmul.f32 %v533, %v533
  %v535 = vmul.f32 %v534, -16.0
  %v536 = vmul.f32 %v535, 1.442695
  %v537 = vpow.pop %v536
  %v538 = vmul.f32 %v537, %v363
  %v539 = vrot.slane %v538, 4
  %v540 = vadd.f32 %v538, %v539
  %v541 = vrot.slane %v540, 2
  %v542 = vadd.f32 %v540, %v541
  %v543 = vrot.slane %v542, 1
  %v544 = vadd.f32 %v542, %v543
  %545 = vst [vmem:[#allocation2 + $0xd] sm:$0x1] %v544
  %v546 = vsub.f32 %v318, 4.673333
  %v547 = vmul.f32 %v546, %v546
  %v548 = vmul.f32 %v547, -16.0
  %v549 = vmul.f32 %v548, 1.442695
  %v550 = vpow.pop %v549
  %v551 = vmul.f32 %v550, %v363
  %v552 = vrot.slane %v551, 4
  %v553 = vadd.f32 %v551, %v552
  %v554 = vrot.slane %v553, 2
  %v555 = vadd.f32 %v553, %v554
  %v556 = vrot.slane %v555, 1
  %v557 = vadd.f32 %v555, %v556
  %558 = vst [vmem:[#allocation2 + $0xe] sm:$0x1] %v557
  %v559 = vsub.f32 %v318, 5.0
  %v560 = vmul.f32 %v559, %v559
  %v561 = vmul.f32 %v560, -16.0
  %v562 = vmul.f32 %v561, 1.442695
  %v563 = vpow.pop %v562
  %v564 = vmul.f32 %v563, %v363
  %v565 = vrot.slane %v564, 4
  %v566 = vadd.f32 %v564, %v565
  %v567 = vrot.slane %v566, 2
  %v568 = vadd.f32 %v566, %v567
  %v569 = vrot.slane %v568, 1
  %v570 = vadd.f32 %v568, %v569
  %571 = vst [vmem:[#allocation2 + $0xf] sm:$0x1] %v570
  %v572 = vld [vmem:[#allocation2] sm:$0xff]
  %v573 = vld [vmem:[#allocation2 + $0x8] sm:$0xff]
  %v574 = vld [vmem:[%s2] sm:$0xff]
  %v575 = vld [vmem:[%s2 + $0x8] sm:$0xff]
  %v576 = vld [vmem:[%s2 + $0x10] sm:$0xff]
  %v577 = vld [vmem:[%s2 + $0x18] sm:$0xff]
  %v578 = vld [vmem:[%s2 + $0x20] sm:$0xff]
  %v579 = vld [vmem:[%s2 + $0x28] sm:$0xff]
  %v580 = vld [vmem:[%s2 + $0x30] sm:$0xff]
  %v581 = vld [vmem:[%s2 + $0x38] sm:$0xff]
  %v582 = vld [vmem:[%s3] sm:$0xff]
  %v583 = vld [vmem:[%s3 + $0x8] sm:$0xff]
  %v584 = vld [vmem:[%s3 + $0x10] sm:$0xff]
  %v585 = vld [vmem:[%s3 + $0x18] sm:$0xff]
  %v586 = vld [vmem:[%s3 + $0x20] sm:$0xff]
  %v587 = vld [vmem:[%s3 + $0x28] sm:$0xff]
  %v588 = vld [vmem:[%s3 + $0x30] sm:$0xff]
  %v589 = vld [vmem:[%s3 + $0x38] sm:$0xff]
  %591 = vset.pattern.permute.xlu0 0
  %592 = vperm.xlu0 %591, %v582
  %v593 = vpop.permute.xlu0 %592
  %596 = vset.pattern.permute.xlu0 0
  %597 = vperm.xlu0 %596, %v583
  %v598 = vpop.permute.xlu0 %597
  %601 = vset.pattern.permute.xlu0 0
  %602 = vperm.xlu0 %601, %v584
  %v603 = vpop.permute.xlu0 %602
  %606 = vset.pattern.permute.xlu0 0
  %607 = vperm.xlu0 %606, %v585
  %v608 = vpop.permute.xlu0 %607
  %611 = vset.pattern.permute.xlu0 0
  %612 = vperm.xlu0 %611, %v586
  %v613 = vpop.permute.xlu0 %612
  %616 = vset.pattern.permute.xlu0 0
  %617 = vperm.xlu0 %616, %v587
  %v618 = vpop.permute.xlu0 %617
  %621 = vset.pattern.permute.xlu0 0
  %622 = vperm.xlu0 %621, %v588
  %v623 = vpop.permute.xlu0 %622
  %626 = vset.pattern.permute.xlu0 0
  %627 = vperm.xlu0 %626, %v589
  %v628 = vpop.permute.xlu0 %627
  %v631 = vsel %vm144, %v574, 0
  %v634 = vsel %vm144, %v575, 0
  %v637 = vsel %vm144, %v576, 0
  %v640 = vsel %vm144, %v577, 0
  %v643 = vsel %vm144, %v578, 0
  %v646 = vsel %vm144, %v579, 0
  %v649 = vsel %vm144, %v580, 0
  %v652 = vsel %vm144, %v581, 0
  %654 = vmatprep.subr.mxu0 0.0
  %655 = vmatpush1.msra.mxu0 %v572
  %656 = vmatprep.subr.mxu0 0.0
  %657 = vmatpush1.msra.mxu0 %v573
  %658 = vmatprep.subr.mxu0 0.0
  %659 = vmatpush1.msra.mxu0 0.0
  %660 = vmatprep.subr.mxu0 0.0
  %661 = vmatpush1.msra.mxu0 0.0
  %662 = vmatprep.subr.mxu0 0.0
  %663 = vmatpush1.msra.mxu0 0.0
  %664 = vmatprep.subr.mxu0 0.0
  %665 = vmatpush1.msra.mxu0 0.0
  %666 = vmatprep.subr.mxu0 0.0
  %667 = vmatpush1.msra.mxu0 0.0
  %668 = vmatprep.subr.mxu0 0.0
  %669 = vmatpush1.msra.mxu0 0.0
  %670 = vmatprep.subr.mxu0 0.0
  %671 = vmatpush1.msra.mxu0 0.0
  %672 = vmatprep.subr.mxu0 0.0
  %673 = vmatpush1.msra.mxu0 0.0
  %674 = vmatprep.subr.mxu0 0.0
  %675 = vmatpush1.msra.mxu0 0.0
  %676 = vmatprep.subr.mxu0 0.0
  %677 = vmatpush1.msra.mxu0 0.0
  %678 = vmatprep.subr.mxu0 0.0
  %679 = vmatpush1.msra.mxu0 0.0
  %680 = vmatprep.subr.mxu0 0.0
  %681 = vmatpush1.msra.mxu0 0.0
  %682 = vmatprep.subr.mxu0 0.0
  %683 = vmatpush1.msra.mxu0 0.0
  %684 = vmatprep.subr.mxu0 0.0
  %685 = vmatpush1.msra.mxu0 0.0
  %686 = vmatprep.subr.mxu0 0.0
  %687 = vmatpush1.msra.mxu0 0.0
  %688 = vmatprep.subr.mxu0 0.0
  %689 = vmatpush1.msra.mxu0 0.0
  %690 = vmatprep.subr.mxu0 0.0
  %691 = vmatpush1.msra.mxu0 0.0
  %692 = vmatprep.subr.mxu0 0.0
  %693 = vmatpush1.msra.mxu0 0.0
  %694 = vmatprep.subr.mxu0 0.0
  %695 = vmatpush1.msra.mxu0 0.0
  %696 = vmatprep.subr.mxu0 0.0
  %697 = vmatpush1.msra.mxu0 0.0
  %698 = vmatprep.subr.mxu0 0.0
  %699 = vmatpush1.msra.mxu0 0.0
  %700 = vmatprep.subr.mxu0 0.0
  %701 = vmatpush1.msra.mxu0 0.0
  %702 = vmatprep.subr.mxu0 0.0
  %703 = vmatpush1.msra.mxu0 0.0
  %704 = vmatprep.subr.mxu0 0.0
  %705 = vmatpush1.msra.mxu0 0.0
  %706 = vmatprep.subr.mxu0 0.0
  %707 = vmatpush1.msra.mxu0 0.0
  %708 = vmatprep.subr.mxu0 0.0
  %709 = vmatpush1.msra.mxu0 0.0
  %710 = vmatprep.subr.mxu0 0.0
  %711 = vmatpush1.msra.mxu0 0.0
  %712 = vmatprep.subr.mxu0 0.0
  %713 = vmatpush1.msra.mxu0 0.0
  %714 = vmatprep.subr.mxu0 0.0
  %715 = vmatpush1.msra.mxu0 0.0
  %716 = vmatprep.subr.mxu0 0.0
  %717 = vmatpush1.msra.mxu0 0.0
  %718 = vmatprep.mubr.f32.mxu0 0.0
  %719 = vmatmul.mubr.f32.gmra.mrb[0].mxu0 %v631
  %v720 = vpop.f32.mrb[0].mxu0
  %v721 = vadd.f32 %v593, %v720
  %v722 = vpop.f32.mrb[0].mxu0
  %723 = vmatprep.mubr.f32.mxu0 0.0
  %724 = vmatmul.mubr.f32.gmra.mrb[0].mxu0 %v634
  %v725 = vpop.f32.mrb[0].mxu0
  %v726 = vadd.f32 %v598, %v725
  %v727 = vpop.f32.mrb[0].mxu0
  %728 = vmatprep.mubr.f32.mxu0 0.0
  %729 = vmatmul.mubr.f32.gmra.mrb[0].mxu0 %v637
  %v730 = vpop.f32.mrb[0].mxu0
  %v731 = vadd.f32 %v603, %v730
  %v732 = vpop.f32.mrb[0].mxu0
  %733 = vmatprep.mubr.f32.mxu0 0.0
  %734 = vmatmul.mubr.f32.gmra.mrb[0].mxu0 %v640
  %v735 = vpop.f32.mrb[0].mxu0
  %v736 = vadd.f32 %v608, %v735
  %v737 = vpop.f32.mrb[0].mxu0
  %738 = vmatprep.mubr.f32.mxu0 0.0
  %739 = vmatmul.mubr.f32.gmra.mrb[0].mxu0 %v643
  %v740 = vpop.f32.mrb[0].mxu0
  %v741 = vadd.f32 %v613, %v740
  %v742 = vpop.f32.mrb[0].mxu0
  %743 = vmatprep.mubr.f32.mxu0 0.0
  %744 = vmatmul.mubr.f32.gmra.mrb[0].mxu0 %v646
  %v745 = vpop.f32.mrb[0].mxu0
  %v746 = vadd.f32 %v618, %v745
  %v747 = vpop.f32.mrb[0].mxu0
  %748 = vmatprep.mubr.f32.mxu0 0.0
  %749 = vmatmul.mubr.f32.gmra.mrb[0].mxu0 %v649
  %v750 = vpop.f32.mrb[0].mxu0
  %v751 = vadd.f32 %v623, %v750
  %v752 = vpop.f32.mrb[0].mxu0
  %753 = vmatprep.mubr.f32.mxu0 0.0
  %754 = vmatmul.mubr.f32.gmra.mrb[0].mxu0 %v652
  %v755 = vpop.f32.mrb[0].mxu0
  %v756 = vadd.f32 %v628, %v755
  %v757 = vpop.f32.mrb[0].mxu0
  %758 = vdwg.mxu0
  %v759 = vxor.u32 %v721, 2147483648
  %v760 = vxor.u32 %v726, 2147483648
  %v761 = vxor.u32 %v731, 2147483648
  %v762 = vxor.u32 %v736, 2147483648
  %v763 = vxor.u32 %v741, 2147483648
  %v764 = vxor.u32 %v746, 2147483648
  %v765 = vxor.u32 %v751, 2147483648
  %v766 = vxor.u32 %v756, 2147483648
  %v767 = vmul.f32 %v759, 1.442695
  %v768 = vpow.pop %v767
  %v769 = vmul.f32 %v760, 1.442695
  %v770 = vpow.pop %v769
  %v771 = vmul.f32 %v761, 1.442695
  %v772 = vpow.pop %v771
  %v773 = vmul.f32 %v762, 1.442695
  %v774 = vpow.pop %v773
  %v775 = vmul.f32 %v763, 1.442695
  %v776 = vpow.pop %v775
  %v777 = vmul.f32 %v764, 1.442695
  %v778 = vpow.pop %v777
  %v779 = vmul.f32 %v765, 1.442695
  %v780 = vpow.pop %v779
  %v781 = vmul.f32 %v766, 1.442695
  %v782 = vpow.pop %v781
  %v783 = vadd.f32 %v768, 1.0
  %v784 = vadd.f32 %v770, 1.0
  %v785 = vadd.f32 %v772, 1.0
  %v786 = vadd.f32 %v774, 1.0
  %v787 = vadd.f32 %v776, 1.0
  %v788 = vadd.f32 %v778, 1.0
  %v789 = vadd.f32 %v780, 1.0
  %v790 = vadd.f32 %v782, 1.0
  %v791 = vrcp.pop %v783
  %v792 = vmul.f32 1.0, %v791
  %v793 = vrcp.pop %v784
  %v794 = vmul.f32 1.0, %v793
  %v795 = vrcp.pop %v785
  %v796 = vmul.f32 1.0, %v795
  %v797 = vrcp.pop %v786
  %v798 = vmul.f32 1.0, %v797
  %v799 = vrcp.pop %v787
  %v800 = vmul.f32 1.0, %v799
  %v801 = vrcp.pop %v788
  %v802 = vmul.f32 1.0, %v801
  %v803 = vrcp.pop %v789
  %v804 = vmul.f32 1.0, %v803
  %v805 = vrcp.pop %v790
  %v806 = vmul.f32 1.0, %v805
  %v807 = vmul.f32 %v721, %v792
  %v808 = vmul.f32 %v726, %v794
  %v809 = vmul.f32 %v731, %v796
  %v810 = vmul.f32 %v736, %v798
  %v811 = vmul.f32 %v741, %v800
  %v812 = vmul.f32 %v746, %v802
  %v813 = vmul.f32 %v751, %v804
  %v814 = vmul.f32 %v756, %v806
  %v815 = vld [vmem:[%s4] sm:$0xff]
  %v816 = vld [vmem:[%s4 + $0x8] sm:$0xff]
  %v817 = vld [vmem:[%s4 + $0x10] sm:$0xff]
  %v818 = vld [vmem:[%s4 + $0x18] sm:$0xff]
  %v819 = vld [vmem:[%s4 + $0x20] sm:$0xff]
  %v820 = vld [vmem:[%s4 + $0x28] sm:$0xff]
  %v821 = vld [vmem:[%s4 + $0x30] sm:$0xff]
  %v822 = vld [vmem:[%s4 + $0x38] sm:$0xff]
  %v823 = vld [vmem:[%s5] sm:$0xff]
  %v824 = vld [vmem:[%s5 + $0x8] sm:$0xff]
  %v825 = vld [vmem:[%s5 + $0x10] sm:$0xff]
  %v826 = vld [vmem:[%s5 + $0x18] sm:$0xff]
  %v827 = vld [vmem:[%s5 + $0x20] sm:$0xff]
  %v828 = vld [vmem:[%s5 + $0x28] sm:$0xff]
  %v829 = vld [vmem:[%s5 + $0x30] sm:$0xff]
  %v830 = vld [vmem:[%s5 + $0x38] sm:$0xff]
  %832 = vset.pattern.permute.xlu0 0
  %833 = vperm.xlu0 %832, %v823
  %v834 = vpop.permute.xlu0 %833
  %837 = vset.pattern.permute.xlu0 0
  %838 = vperm.xlu0 %837, %v824
  %v839 = vpop.permute.xlu0 %838
  %842 = vset.pattern.permute.xlu0 0
  %843 = vperm.xlu0 %842, %v825
  %v844 = vpop.permute.xlu0 %843
  %847 = vset.pattern.permute.xlu0 0
  %848 = vperm.xlu0 %847, %v826
  %v849 = vpop.permute.xlu0 %848
  %852 = vset.pattern.permute.xlu0 0
  %853 = vperm.xlu0 %852, %v827
  %v854 = vpop.permute.xlu0 %853
  %857 = vset.pattern.permute.xlu0 0
  %858 = vperm.xlu0 %857, %v828
  %v859 = vpop.permute.xlu0 %858
  %862 = vset.pattern.permute.xlu0 0
  %863 = vperm.xlu0 %862, %v829
  %v864 = vpop.permute.xlu0 %863
  %867 = vset.pattern.permute.xlu0 0
  %868 = vperm.xlu0 %867, %v830
  %v869 = vpop.permute.xlu0 %868
  %vm871 = vcmask 523264
  %v873 = vsel %vm871, %v815, 0
  %v876 = vsel %vm871, %v816, 0
  %v879 = vsel %vm871, %v817, 0
  %v882 = vsel %vm871, %v818, 0
  %v885 = vsel %vm871, %v819, 0
  %v888 = vsel %vm871, %v820, 0
  %v891 = vsel %vm871, %v821, 0
  %v894 = vsel %vm871, %v822, 0
  %896 = vmatprep.subr.mxu0 0.0
  %897 = vmatpush1.msra.mxu0 %v807
  %898 = vmatprep.subr.mxu0 0.0
  %899 = vmatpush1.msra.mxu0 %v808
  %900 = vmatprep.subr.mxu0 0.0
  %901 = vmatpush1.msra.mxu0 %v809
  %902 = vmatprep.subr.mxu0 0.0
  %903 = vmatpush1.msra.mxu0 %v810
  %904 = vmatprep.subr.mxu0 0.0
  %905 = vmatpush1.msra.mxu0 %v811
  %906 = vmatprep.subr.mxu0 0.0
  %907 = vmatpush1.msra.mxu0 %v812
  %908 = vmatprep.subr.mxu0 0.0
  %909 = vmatpush1.msra.mxu0 %v813
  %910 = vmatprep.subr.mxu0 0.0
  %911 = vmatpush1.msra.mxu0 %v814
  %912 = vmatprep.subr.mxu0 0.0
  %913 = vmatpush1.msra.mxu0 0.0
  %914 = vmatprep.subr.mxu0 0.0
  %915 = vmatpush1.msra.mxu0 0.0
  %916 = vmatprep.subr.mxu0 0.0
  %917 = vmatpush1.msra.mxu0 0.0
  %918 = vmatprep.subr.mxu0 0.0
  %919 = vmatpush1.msra.mxu0 0.0
  %920 = vmatprep.subr.mxu0 0.0
  %921 = vmatpush1.msra.mxu0 0.0
  %922 = vmatprep.subr.mxu0 0.0
  %923 = vmatpush1.msra.mxu0 0.0
  %924 = vmatprep.subr.mxu0 0.0
  %925 = vmatpush1.msra.mxu0 0.0
  %926 = vmatprep.subr.mxu0 0.0
  %927 = vmatpush1.msra.mxu0 0.0
  %928 = vmatprep.subr.mxu0 0.0
  %929 = vmatpush1.msra.mxu0 0.0
  %930 = vmatprep.subr.mxu0 0.0
  %931 = vmatpush1.msra.mxu0 0.0
  %932 = vmatprep.subr.mxu0 0.0
  %933 = vmatpush1.msra.mxu0 0.0
  %934 = vmatprep.subr.mxu0 0.0
  %935 = vmatpush1.msra.mxu0 0.0
  %936 = vmatprep.subr.mxu0 0.0
  %937 = vmatpush1.msra.mxu0 0.0
  %938 = vmatprep.subr.mxu0 0.0
  %939 = vmatpush1.msra.mxu0 0.0
  %940 = vmatprep.subr.mxu0 0.0
  %941 = vmatpush1.msra.mxu0 0.0
  %942 = vmatprep.subr.mxu0 0.0
  %943 = vmatpush1.msra.mxu0 0.0
  %944 = vmatprep.subr.mxu0 0.0
  %945 = vmatpush1.msra.mxu0 0.0
  %946 = vmatprep.subr.mxu0 0.0
  %947 = vmatpush1.msra.mxu0 0.0
  %948 = vmatprep.subr.mxu0 0.0
  %949 = vmatpush1.msra.mxu0 0.0
  %950 = vmatprep.subr.mxu0 0.0
  %951 = vmatpush1.msra.mxu0 0.0
  %952 = vmatprep.subr.mxu0 0.0
  %953 = vmatpush1.msra.mxu0 0.0
  %954 = vmatprep.subr.mxu0 0.0
  %955 = vmatpush1.msra.mxu0 0.0
  %956 = vmatprep.subr.mxu0 0.0
  %957 = vmatpush1.msra.mxu0 0.0
  %958 = vmatprep.subr.mxu0 0.0
  %959 = vmatpush1.msra.mxu0 0.0
  %960 = vmatprep.mubr.f32.mxu0 0.0
  %961 = vmatmul.mubr.f32.gmra.mrb[0].mxu0 %v873
  %v962 = vpop.f32.mrb[0].mxu0
  %v963 = vadd.f32 %v834, %v962
  %v964 = vpop.f32.mrb[0].mxu0
  %965 = vmatprep.mubr.f32.mxu0 0.0
  %966 = vmatmul.mubr.f32.gmra.mrb[0].mxu0 %v876
  %v967 = vpop.f32.mrb[0].mxu0
  %v968 = vadd.f32 %v839, %v967
  %v969 = vpop.f32.mrb[0].mxu0
  %970 = vmatprep.mubr.f32.mxu0 0.0
  %971 = vmatmul.mubr.f32.gmra.mrb[0].mxu0 %v879
  %v972 = vpop.f32.mrb[0].mxu0
  %v973 = vadd.f32 %v844, %v972
  %v974 = vpop.f32.mrb[0].mxu0
  %975 = vmatprep.mubr.f32.mxu0 0.0
  %976 = vmatmul.mubr.f32.gmra.mrb[0].mxu0 %v882
  %v977 = vpop.f32.mrb[0].mxu0
  %v978 = vadd.f32 %v849, %v977
  %v979 = vpop.f32.mrb[0].mxu0
  %980 = vmatprep.mubr.f32.mxu0 0.0
  %981 = vmatmul.mubr.f32.gmra.mrb[0].mxu0 %v885
  %v982 = vpop.f32.mrb[0].mxu0
  %v983 = vadd.f32 %v854, %v982
  %v984 = vpop.f32.mrb[0].mxu0
  %985 = vmatprep.mubr.f32.mxu0 0.0
  %986 = vmatmul.mubr.f32.gmra.mrb[0].mxu0 %v888
  %v987 = vpop.f32.mrb[0].mxu0
  %v988 = vadd.f32 %v859, %v987
  %v989 = vpop.f32.mrb[0].mxu0
  %990 = vmatprep.mubr.f32.mxu0 0.0
  %991 = vmatmul.mubr.f32.gmra.mrb[0].mxu0 %v891
  %v992 = vpop.f32.mrb[0].mxu0
  %v993 = vadd.f32 %v864, %v992
  %v994 = vpop.f32.mrb[0].mxu0
  %995 = vmatprep.mubr.f32.mxu0 0.0
  %996 = vmatmul.mubr.f32.gmra.mrb[0].mxu0 %v894
  %v997 = vpop.f32.mrb[0].mxu0
  %v998 = vadd.f32 %v869, %v997
  %v999 = vpop.f32.mrb[0].mxu0
  %1000 = vdwg.mxu0
  %v1001 = vxor.u32 %v963, 2147483648
  %v1002 = vxor.u32 %v968, 2147483648
  %v1003 = vxor.u32 %v973, 2147483648
  %v1004 = vxor.u32 %v978, 2147483648
  %v1005 = vxor.u32 %v983, 2147483648
  %v1006 = vxor.u32 %v988, 2147483648
  %v1007 = vxor.u32 %v993, 2147483648
  %v1008 = vxor.u32 %v998, 2147483648
  %v1009 = vmul.f32 %v1001, 1.442695
  %v1010 = vpow.pop %v1009
  %v1011 = vmul.f32 %v1002, 1.442695
  %v1012 = vpow.pop %v1011
  %v1013 = vmul.f32 %v1003, 1.442695
  %v1014 = vpow.pop %v1013
  %v1015 = vmul.f32 %v1004, 1.442695
  %v1016 = vpow.pop %v1015
  %v1017 = vmul.f32 %v1005, 1.442695
  %v1018 = vpow.pop %v1017
  %v1019 = vmul.f32 %v1006, 1.442695
  %v1020 = vpow.pop %v1019
  %v1021 = vmul.f32 %v1007, 1.442695
  %v1022 = vpow.pop %v1021
  %v1023 = vmul.f32 %v1008, 1.442695
  %v1024 = vpow.pop %v1023
  %v1025 = vadd.f32 %v1010, 1.0
  %v1026 = vadd.f32 %v1012, 1.0
  %v1027 = vadd.f32 %v1014, 1.0
  %v1028 = vadd.f32 %v1016, 1.0
  %v1029 = vadd.f32 %v1018, 1.0
  %v1030 = vadd.f32 %v1020, 1.0
  %v1031 = vadd.f32 %v1022, 1.0
  %v1032 = vadd.f32 %v1024, 1.0
  %v1033 = vrcp.pop %v1025
  %v1034 = vmul.f32 1.0, %v1033
  %v1035 = vrcp.pop %v1026
  %v1036 = vmul.f32 1.0, %v1035
  %v1037 = vrcp.pop %v1027
  %v1038 = vmul.f32 1.0, %v1037
  %v1039 = vrcp.pop %v1028
  %v1040 = vmul.f32 1.0, %v1039
  %v1041 = vrcp.pop %v1029
  %v1042 = vmul.f32 1.0, %v1041
  %v1043 = vrcp.pop %v1030
  %v1044 = vmul.f32 1.0, %v1043
  %v1045 = vrcp.pop %v1031
  %v1046 = vmul.f32 1.0, %v1045
  %v1047 = vrcp.pop %v1032
  %v1048 = vmul.f32 1.0, %v1047
  %v1049 = vmul.f32 %v963, %v1034
  %v1050 = vmul.f32 %v968, %v1036
  %v1051 = vmul.f32 %v973, %v1038
  %v1052 = vmul.f32 %v978, %v1040
  %v1053 = vmul.f32 %v983, %v1042
  %v1054 = vmul.f32 %v988, %v1044
  %v1055 = vmul.f32 %v993, %v1046
  %v1056 = vmul.f32 %v998, %v1048
  %1057 = vmatprep.subr.mxu0 0.0
  %1058 = vmatpush1.msra.mxu0 %v128
  %1059 = vmatprep.subr.mxu0 0.0
  %1060 = vmatpush1.msra.mxu0 %v129
  %1061 = vmatprep.subr.mxu0 0.0
  %1062 = vmatpush1.msra.mxu0 %v130
  %1063 = vmatprep.subr.mxu0 0.0
  %1064 = vmatpush1.msra.mxu0 %v131
  %1065 = vmatprep.subr.mxu0 0.0
  %1066 = vmatpush1.msra.mxu0 %v132
  %1067 = vmatprep.subr.mxu0 0.0
  %1068 = vmatpush1.msra.mxu0 %v133
  %1069 = vmatprep.subr.mxu0 0.0
  %1070 = vmatpush1.msra.mxu0 %v134
  %1071 = vmatprep.subr.mxu0 0.0
  %1072 = vmatpush1.msra.mxu0 %v135
  %1073 = vmatprep.subr.mxu0 0.0
  %1074 = vmatpush1.msra.mxu0 %v136
  %1075 = vmatprep.subr.mxu0 0.0
  %1076 = vmatpush1.msra.mxu0 %v137
  %1077 = vmatprep.subr.mxu0 0.0
  %1078 = vmatpush1.msra.mxu0 %v138
  %1079 = vmatprep.subr.mxu0 0.0
  %1080 = vmatpush1.msra.mxu0 %v139
  %1081 = vmatprep.subr.mxu0 0.0
  %1082 = vmatpush1.msra.mxu0 %v140
  %1083 = vmatprep.subr.mxu0 0.0
  %1084 = vmatpush1.msra.mxu0 %v141
  %1085 = vmatprep.subr.mxu0 0.0
  %1086 = vmatpush1.msra.mxu0 %v142
  %1087 = vmatprep.subr.mxu0 0.0
  %1088 = vmatpush1.msra.mxu0 %v143
  %1089 = vmatprep.subr.mxu0 0.0
  %1090 = vmatpush1.msra.mxu0 0.0
  %1091 = vmatprep.subr.mxu0 0.0
  %1092 = vmatpush1.msra.mxu0 0.0
  %1093 = vmatprep.subr.mxu0 0.0
  %1094 = vmatpush1.msra.mxu0 0.0
  %1095 = vmatprep.subr.mxu0 0.0
  %1096 = vmatpush1.msra.mxu0 0.0
  %1097 = vmatprep.subr.mxu0 0.0
  %1098 = vmatpush1.msra.mxu0 0.0
  %1099 = vmatprep.subr.mxu0 0.0
  %1100 = vmatpush1.msra.mxu0 0.0
  %1101 = vmatprep.subr.mxu0 0.0
  %1102 = vmatpush1.msra.mxu0 0.0
  %1103 = vmatprep.subr.mxu0 0.0
  %1104 = vmatpush1.msra.mxu0 0.0
  %1105 = vmatprep.subr.mxu0 0.0
  %1106 = vmatpush1.msra.mxu0 0.0
  %1107 = vmatprep.subr.mxu0 0.0
  %1108 = vmatpush1.msra.mxu0 0.0
  %1109 = vmatprep.subr.mxu0 0.0
  %1110 = vmatpush1.msra.mxu0 0.0
  %1111 = vmatprep.subr.mxu0 0.0
  %1112 = vmatpush1.msra.mxu0 0.0
  %1113 = vmatprep.subr.mxu0 0.0
  %1114 = vmatpush1.msra.mxu0 0.0
  %1115 = vmatprep.subr.mxu0 0.0
  %1116 = vmatpush1.msra.mxu0 0.0
  %1117 = vmatprep.subr.mxu0 0.0
  %1118 = vmatpush1.msra.mxu0 0.0
  %1119 = vmatprep.subr.mxu0 0.0
  %1120 = vmatpush1.msra.mxu0 0.0
  %1121 = vmatprep.mubr.f32.mxu0 0.0
  %1122 = vmatmul.mubr.f32.gmra.mrb[0].mxu0 %v1049
  %v1123 = vpop.f32.mrb[0].mxu0
  %v1124 = vadd.f32 0.0, %v1123
  %v1125 = vpop.f32.mrb[0].mxu0
  %1126 = vmatprep.mubr.f32.mxu0 0.0
  %1127 = vmatmul.mubr.f32.gmra.mrb[0].mxu0 %v1050
  %v1128 = vpop.f32.mrb[0].mxu0
  %v1129 = vadd.f32 0.0, %v1128
  %v1130 = vpop.f32.mrb[0].mxu0
  %1131 = vmatprep.mubr.f32.mxu0 0.0
  %1132 = vmatmul.mubr.f32.gmra.mrb[0].mxu0 %v1051
  %v1133 = vpop.f32.mrb[0].mxu0
  %v1134 = vadd.f32 0.0, %v1133
  %v1135 = vpop.f32.mrb[0].mxu0
  %1136 = vmatprep.mubr.f32.mxu0 0.0
  %1137 = vmatmul.mubr.f32.gmra.mrb[0].mxu0 %v1052
  %v1138 = vpop.f32.mrb[0].mxu0
  %v1139 = vadd.f32 0.0, %v1138
  %v1140 = vpop.f32.mrb[0].mxu0
  %1141 = vmatprep.mubr.f32.mxu0 0.0
  %1142 = vmatmul.mubr.f32.gmra.mrb[0].mxu0 %v1053
  %v1143 = vpop.f32.mrb[0].mxu0
  %v1144 = vadd.f32 0.0, %v1143
  %v1145 = vpop.f32.mrb[0].mxu0
  %1146 = vmatprep.mubr.f32.mxu0 0.0
  %1147 = vmatmul.mubr.f32.gmra.mrb[0].mxu0 %v1054
  %v1148 = vpop.f32.mrb[0].mxu0
  %v1149 = vadd.f32 0.0, %v1148
  %v1150 = vpop.f32.mrb[0].mxu0
  %1151 = vmatprep.mubr.f32.mxu0 0.0
  %1152 = vmatmul.mubr.f32.gmra.mrb[0].mxu0 %v1055
  %v1153 = vpop.f32.mrb[0].mxu0
  %v1154 = vadd.f32 0.0, %v1153
  %v1155 = vpop.f32.mrb[0].mxu0
  %1156 = vmatprep.mubr.f32.mxu0 0.0
  %1157 = vmatmul.mubr.f32.gmra.mrb[0].mxu0 %v1056
  %v1158 = vpop.f32.mrb[0].mxu0
  %v1159 = vadd.f32 0.0, %v1158
  %v1160 = vpop.f32.mrb[0].mxu0
  %1161 = vdwg.mxu0
  %v1162 = vld [vmem:[%s6] sm:$0xff]
  %v1163 = vld [vmem:[%s6 + $0x8] sm:$0xff]
  %v1164 = vld [vmem:[%s6 + $0x10] sm:$0xff]
  %v1165 = vld [vmem:[%s6 + $0x18] sm:$0xff]
  %v1166 = vld [vmem:[%s6 + $0x20] sm:$0xff]
  %v1167 = vld [vmem:[%s6 + $0x28] sm:$0xff]
  %v1168 = vld [vmem:[%s6 + $0x30] sm:$0xff]
  %v1169 = vld [vmem:[%s6 + $0x38] sm:$0xff]
  %1171 = vset.pattern.permute.xlu0 0
  %1172 = vperm.xlu0 %1171, %v1162
  %v1173 = vpop.permute.xlu0 %1172
  %1176 = vset.pattern.permute.xlu0 0
  %1177 = vperm.xlu0 %1176, %v1163
  %v1178 = vpop.permute.xlu0 %1177
  %1181 = vset.pattern.permute.xlu0 0
  %1182 = vperm.xlu0 %1181, %v1164
  %v1183 = vpop.permute.xlu0 %1182
  %1186 = vset.pattern.permute.xlu0 0
  %1187 = vperm.xlu0 %1186, %v1165
  %v1188 = vpop.permute.xlu0 %1187
  %1191 = vset.pattern.permute.xlu0 0
  %1192 = vperm.xlu0 %1191, %v1166
  %v1193 = vpop.permute.xlu0 %1192
  %1196 = vset.pattern.permute.xlu0 0
  %1197 = vperm.xlu0 %1196, %v1167
  %v1198 = vpop.permute.xlu0 %1197
  %1201 = vset.pattern.permute.xlu0 0
  %1202 = vperm.xlu0 %1201, %v1168
  %v1203 = vpop.permute.xlu0 %1202
  %1206 = vset.pattern.permute.xlu0 0
  %1207 = vperm.xlu0 %1206, %v1169
  %v1208 = vpop.permute.xlu0 %1207
  %v1210 = vmul.f32 %v1124, %v1173
  %v1211 = vmul.f32 %v1129, %v1178
  %v1212 = vmul.f32 %v1134, %v1183
  %v1213 = vmul.f32 %v1139, %v1188
  %v1214 = vmul.f32 %v1144, %v1193
  %v1215 = vmul.f32 %v1149, %v1198
  %v1216 = vmul.f32 %v1154, %v1203
  %v1217 = vmul.f32 %v1159, %v1208
  %v1218 = vsel %vm144, %v1210, 0.0
  %v1219 = vsel %vm144, %v1211, 0.0
  %v1220 = vadd.f32 %v1218, %v1219
  %v1221 = vsel %vm144, %v1212, 0.0
  %v1222 = vadd.f32 %v1220, %v1221
  %v1223 = vsel %vm144, %v1213, 0.0
  %v1224 = vadd.f32 %v1222, %v1223
  %v1225 = vsel %vm144, %v1214, 0.0
  %v1226 = vadd.f32 %v1224, %v1225
  %v1227 = vsel %vm144, %v1215, 0.0
  %v1228 = vadd.f32 %v1226, %v1227
  %v1229 = vsel %vm144, %v1216, 0.0
  %v1230 = vadd.f32 %v1228, %v1229
  %v1231 = vsel %vm144, %v1217, 0.0
  %v1232 = vadd.f32 %v1230, %v1231
  %v1233 = vrot.slane %v1232, 4
  %v1234 = vadd.f32 %v1232, %v1233
  %v1235 = vrot.slane %v1234, 2
  %v1236 = vadd.f32 %v1234, %v1235
  %v1237 = vrot.slane %v1236, 1
  %v1238 = vadd.f32 %v1236, %v1237
  %vm1239 = vcmask 122880
  %1240 = vst.msk [vmem:[%s7] sm:$0x1] %vm1239, %v1238
  // Predicated region
  $region30: #{nnp_forward.1} parent=0 // pred_check
    _
  $region31: #{nnp_forward.1} parent=0 // pred_check_branch
    %1242 = sbr.rel (0) target = $region33
  $region32: #{nnp_forward.1} parent=0 // pred_region
    _
  $region33: #{nnp_forward.1} parent=0 // pred_fallthru
    _
  // Predicated region
  $region34: #{nnp_forward.1} parent=0 // pred_check
    _
  $region35: #{nnp_forward.1} parent=0 // pred_check_branch
    %1244 = sbr.rel (0) target = $region37
  $region36: #{nnp_forward.1} parent=0 // pred_region
    _
  $region37: #{nnp_forward.1} parent=0 // pred_fallthru
    _

</llo_original>
